<compile_context>
chip_gen: v7x
topology: tpu7x:2x2x1
jax: 0.10.0
libtpu: 0.0.40
codegen_flags: <defaults>
</compile_context>

<pallas_src>
import functools

import jax
import jax.numpy as jnp
from jax.experimental import pallas as pl
from jax.experimental.pallas import tpu as pltpu


def _linear_system_kernel(p_ref, mu_ref, mnx_ref, mc_ref, mly_ref, x0_ref,
                          u_ref, nx_ref, ny_ref,
                          x_out_ref, y_out_ref,
                          carry_ref):
    """One grid step == one block of T_BLK time steps (block-scan form).

    Refs (per grid step t):
      p_ref    : (x_dim, T*x_dim)        stacked powers (a^T)^{1..T}
      mu_ref   : (T*u_dim, T*x_dim)      lower-block-Toeplitz  b^T (a^T)^k
      mnx_ref  : (T*x_dim, T*x_dim)      lower-block-Toeplitz  lx^T (a^T)^k
      mc_ref   : (T*x_dim, T*y_dim)      block-diag(c^T)
      mly_ref  : (T*y_dim, T*y_dim)      block-diag(ly^T)
      x0_ref   : (B, x_dim)              initial state
      u_ref    : (B, T*u_dim)            controls for this time block (flattened)
      nx_ref   : (B, T*x_dim)            std-normal process noise (flattened)
      ny_ref   : (B, T*y_dim)            std-normal observation noise (flattened)
      x_out_ref: (B, T*x_dim)            state output block (lane dense)
      y_out_ref: (B, T*y_dim)            observation output block (lane dense)
      carry_ref: VMEM (B, x_dim) f32     recurrent state carried across blocks
    """
    x_dim = carry_ref.shape[-1]

    @pl.when(pl.program_id(0) == 0)
    def _():
        carry_ref[...] = x0_ref[...].astype(jnp.float32)

    x_start = carry_ref[...]                                   # (B, x_dim)

    # Whole block of states in three lane-dense MXU matmuls:
    #   X[b, t*x+j] = x_start (a^T)^{t+1} + sum_{s<=t} (u_s b^T + eps_s lx^T)(a^T)^{t-s}
    x_blk = (
        jnp.dot(x_start, p_ref[...], preferred_element_type=jnp.float32)
        + jnp.dot(u_ref[...], mu_ref[...], preferred_element_type=jnp.float32)
        + jnp.dot(nx_ref[...], mnx_ref[...], preferred_element_type=jnp.float32)
    )                                                          # (B, T*x_dim)

    x_out_ref[...] = x_blk.astype(x_out_ref.dtype)             # one contiguous store
    carry_ref[...] = x_blk[:, -x_dim:]                         # last state -> next block

    # Observations for the whole block: y_t = x_t c^T + eps_y,t ly^T
    y_blk = (
        jnp.dot(x_blk, mc_ref[...], preferred_element_type=jnp.float32)
        + jnp.dot(ny_ref[...], mly_ref[...], preferred_element_type=jnp.float32)
    )                                                          # (B, T*y_dim)
    y_out_ref[...] = y_blk.astype(y_out_ref.dtype)


def _block_scan_operators(a, b, c, lx, ly, t_blk):
    """Precompute the dense block-transition operators (f32, HIGHEST precision)."""
    hp = jax.lax.Precision.HIGHEST
    x_dim = a.shape[0]
    aT = jnp.transpose(a).astype(jnp.float32)
    bT = jnp.transpose(b).astype(jnp.float32)
    cT = jnp.transpose(c).astype(jnp.float32)
    lxT = jnp.transpose(lx).astype(jnp.float32)
    lyT = jnp.transpose(ly).astype(jnp.float32)

    # powers[k] = (a^T)^k, k = 0..t_blk
    powers = [jnp.eye(x_dim, dtype=jnp.float32)]
    for _ in range(t_blk):
        powers.append(jnp.dot(powers[-1], aT, precision=hp))
    pw = jnp.stack(powers, axis=0)                             # (T+1, x, x)

    # P: x_start -> all T states.  P[i, t*x + j] = (a^T)^{t+1}[i, j]
    p_x0 = jnp.transpose(pw[1:], (1, 0, 2)).reshape(x_dim, t_blk * x_dim)

    def lower_toeplitz(g):
        # out[s*din+i, t*x+j] = (g @ (a^T)^{t-s})[i, j]  for t >= s, else 0
        din = g.shape[0]
        gk = jnp.einsum("ij,kjl->kil", g, pw[:t_blk], precision=hp)  # (T, din, x)
        s_idx = jnp.arange(t_blk)[:, None]
        t_idx = jnp.arange(t_blk)[None, :]
        k = t_idx - s_idx                                      # (T, T)
        blocks = gk[jnp.where(k >= 0, k, 0)]                   # (T, T, din, x)
        blocks = jnp.where((k >= 0)[:, :, None, None], blocks, 0.0)
        return jnp.transpose(blocks, (0, 2, 1, 3)).reshape(t_blk * din, t_blk * x_dim)

    m_u = lower_toeplitz(bT)                                   # (T*u, T*x)
    m_nx = lower_toeplitz(lxT)                                 # (T*x, T*x)

    eye_t = jnp.eye(t_blk, dtype=jnp.float32)
    m_c = jnp.kron(eye_t, cT)                                  # (T*x, T*y)
    m_ly = jnp.kron(eye_t, lyT)                                # (T*y, T*y)
    return p_x0, m_u, m_nx, m_c, m_ly


@functools.partial(jax.jit, static_argnames=("n", "t_blk"))
def linear_system_forward(a, b, c, lx, ly, x0, u, noise_x, noise_y, *, n, t_blk=128):
    """Pallas implementation of LinearSystem.forward.

    Args (batch-major, like PyTorch):
      x0      : (B, x_dim)
      u       : (B, n, u_dim)
      noise_x : (B, n, x_dim)   standard normal draws (lx applied in-kernel operators)
      noise_y : (B, n, y_dim)   standard normal draws (ly applied in-kernel operators)
    Returns:
      x : (B, n, x_dim), y : (B, n, y_dim)
    """
    B = x0.shape[0]
    x_dim = a.shape[0]
    u_dim = b.shape[1]
    y_dim = c.shape[0]

    # Time-block size: multiple of 128 so every (B, T*dim) block is lane-dense.
    t_blk = max(128, (int(t_blk) // 128) * 128)
    # Keep the dense block-transition operators small.
    # TODO(synk): for large x_dim the dense block-scan operators blow up; fall
    # back to an in-block sequential recurrence in that regime.
    while t_blk > 128 and t_blk * x_dim > 1024:
        t_blk -= 128

    n_blocks = -(-n // t_blk)
    n_pad = n_blocks * t_blk
    if n_pad != n:
        pad = ((0, 0), (0, n_pad - n), (0, 0))
        u = jnp.pad(u, pad)
        noise_x = jnp.pad(noise_x, pad)
        noise_y = jnp.pad(noise_y, pad)

    # Flatten time*feature into the lane axis (free row-major reshapes).
    u2 = u.astype(jnp.float32).reshape(B, n_pad * u_dim)
    nx2 = noise_x.astype(jnp.float32).reshape(B, n_pad * x_dim)
    ny2 = noise_y.astype(jnp.float32).reshape(B, n_pad * y_dim)

    p_x0, m_u, m_nx, m_c, m_ly = _block_scan_operators(a, b, c, lx, ly, t_blk)

    weight = lambda shape: pl.BlockSpec(shape, lambda t: (0, 0))
    stream = lambda d: pl.BlockSpec((B, t_blk * d), lambda t: (0, t))

    # Advisory cost estimate for the XLA scheduler.
    flops = n_blocks * (
        2 * B * (x_dim + t_blk * u_dim + t_blk * x_dim) * (t_blk * x_dim)
        + 2 * B * (t_blk * x_dim + t_blk * y_dim) * (t_blk * y_dim))
    w_elems = (p_x0.size + m_u.size + m_nx.size + m_c.size + m_ly.size)
    bytes_accessed = 4 * (B * n_pad * (u_dim + 2 * x_dim + 2 * y_dim)
                          + B * x_dim + w_elems)
    cost = pl.CostEstimate(flops=flops, transcendentals=0,
                           bytes_accessed=bytes_accessed)

    x_flat, y_flat = pl.pallas_call(
        _linear_system_kernel,
        out_shape=(
            jax.ShapeDtypeStruct((B, n_pad * x_dim), jnp.float32),
            jax.ShapeDtypeStruct((B, n_pad * y_dim), jnp.float32),
        ),
        grid_spec=pltpu.PrefetchScalarGridSpec(
            num_scalar_prefetch=0,
            grid=(n_blocks,),
            in_specs=[
                weight((x_dim, t_blk * x_dim)),          # P (powers of a^T)
                weight((t_blk * u_dim, t_blk * x_dim)),  # M_u
                weight((t_blk * x_dim, t_blk * x_dim)),  # M_nx
                weight((t_blk * x_dim, t_blk * y_dim)),  # M_c
                weight((t_blk * y_dim, t_blk * y_dim)),  # M_ly
                weight((B, x_dim)),                      # x0
                stream(u_dim),                           # u      block
                stream(x_dim),                           # eps_x  block
                stream(y_dim),                           # eps_y  block
            ],
            out_specs=[
                stream(x_dim),                           # x block (lane dense)
                stream(y_dim),                           # y block (lane dense)
            ],
            scratch_shapes=[
                pltpu.VMEM((B, x_dim), jnp.float32),     # recurrent carry
            ],
        ),
        compiler_params=pltpu.CompilerParams(
            dimension_semantics=("arbitrary",),          # carried recurrence over time
            vmem_limit_bytes=32 * 1024 * 1024,
        ),
        cost_estimate=cost,
    )(p_x0, m_u, m_nx, m_c, m_ly, x0.astype(jnp.float32), u2, nx2, ny2)

    x_full = x_flat.reshape(B, n_pad, x_dim)
    y_full = y_flat.reshape(B, n_pad, y_dim)
    if n_pad != n:
        x_full = x_full[:, :n, :]
        y_full = y_full[:, :n, :]
    return x_full, y_full


def _reference_forward(a, b, c, lx, ly, x0, u, noise_x, noise_y, n):
    """Pure-JAX reference matching the PyTorch loop semantics."""
    hp = jax.lax.Precision.HIGHEST
    noisex = jnp.einsum("ij,bkj->bki", lx, noise_x, precision=hp)
    noisey = jnp.einsum("ij,bkj->bki", ly, noise_y, precision=hp)

    def step(x_prev, inp):
        u_k, nx_k = inp
        x_k = (jnp.dot(x_prev, a.T, precision=hp)
               + jnp.dot(u_k, b.T, precision=hp) + nx_k)
        y_k = jnp.dot(x_k, c.T, precision=hp)
        return x_k, (x_k, y_k)

    _, (xs, ys) = jax.lax.scan(
        step, x0, (jnp.swapaxes(u, 0, 1), jnp.swapaxes(noisex, 0, 1)))
    x = jnp.swapaxes(xs, 0, 1)
    y = jnp.swapaxes(ys, 0, 1) + noisey
    return x, y


if __name__ == "__main__":
    # small shapes: B=2, x_dim=4, y_dim=3, u_dim=2, n=300
    # (n=300 exercises multiple 128-step time blocks AND the padded final block)
    B, x_dim, y_dim, u_dim, n = 2, 4, 3, 2, 300

    key = jax.random.PRNGKey(0)
    keys = jax.random.split(key, 9)

    a = jax.random.normal(keys[0], (x_dim, x_dim), jnp.float32) * 0.3
    b = jax.random.normal(keys[1], (x_dim, u_dim), jnp.float32) * 0.3
    c = jax.random.normal(keys[2], (y_dim, x_dim), jnp.float32) * 0.3
    lx = jax.random.normal(keys[3], (x_dim, x_dim), jnp.float32) * 0.1
    ly = jax.random.normal(keys[4], (y_dim, y_dim), jnp.float32) * 0.1

    x0 = jax.random.normal(keys[5], (B, x_dim), jnp.float32)
    u = jax.random.normal(keys[6], (B, n, u_dim), jnp.float32)
    # standard-normal draws (equivalent to torch.randn_like); lx/ly applied via
    # the precomputed block operators inside the kernel
    noise_x = jax.random.normal(keys[7], (B, n, x_dim), jnp.float32)
    noise_y = jax.random.normal(keys[8], (B, n, y_dim), jnp.float32)

    x_out, y_out = linear_system_forward(a, b, c, lx, ly, x0, u, noise_x, noise_y, n=n)
    jax.block_until_ready((x_out, y_out))

    x_ref, y_ref = _reference_forward(a, b, c, lx, ly, x0, u, noise_x, noise_y, n)
    assert x_out.shape == (B, n, x_dim) and y_out.shape == (B, n, y_dim)
    # Tolerance note: the block-scan reorders the f32 summation relative to the
    # sequential reference and in/out-of-kernel TPU matmul precision defaults
    # differ; genuine semantic bugs would produce O(0.1+) errors.
    assert jnp.allclose(x_out, x_ref, atol=1e-2, rtol=1e-2)
    assert jnp.allclose(y_out, y_ref, atol=1e-2, rtol=1e-2)

    print("KERNEL_OK")
</pallas_src>

<mosaic_0001>
module attributes {stable_mosaic.version = 11 : i64} {
  func.func @_linear_system_kernel(%arg0: i32, %arg1: memref<4x512xf32, #tpu.memory_space<vmem>>, %arg2: memref<256x512xf32, #tpu.memory_space<vmem>>, %arg3: memref<512x512xf32, #tpu.memory_space<vmem>>, %arg4: memref<512x384xf32, #tpu.memory_space<vmem>>, %arg5: memref<384x384xf32, #tpu.memory_space<vmem>>, %arg6: memref<2x4xf32, #tpu.memory_space<vmem>>, %arg7: memref<2x256xf32, #tpu.memory_space<vmem>>, %arg8: memref<2x512xf32, #tpu.memory_space<vmem>>, %arg9: memref<2x384xf32, #tpu.memory_space<vmem>>, %arg10: memref<2x512xf32, #tpu.memory_space<vmem>>, %arg11: memref<2x384xf32, #tpu.memory_space<vmem>>, %arg12: memref<2x4xf32, #tpu.memory_space<vmem>>) attributes {dimension_semantics = [#tpu.dimension_semantics<arbitrary>], iteration_bounds = array<i64: 3>, scalar_prefetch = 0 : i64, scratch_operands = 1 : i64, tpu.core_type = #tpu.core_type<tc>, window_params = [{pipeline_mode = #tpu.pipeline_mode<synchronous>, transform_indices = @transform_0, window_bounds = array<i64: 4, 512>}, {pipeline_mode = #tpu.pipeline_mode<synchronous>, transform_indices = @transform_1, window_bounds = array<i64: 256, 512>}, {pipeline_mode = #tpu.pipeline_mode<synchronous>, transform_indices = @transform_2, window_bounds = array<i64: 512, 512>}, {pipeline_mode = #tpu.pipeline_mode<synchronous>, transform_indices = @transform_3, window_bounds = array<i64: 512, 384>}, {pipeline_mode = #tpu.pipeline_mode<synchronous>, transform_indices = @transform_4, window_bounds = array<i64: 384, 384>}, {pipeline_mode = #tpu.pipeline_mode<synchronous>, transform_indices = @transform_5, window_bounds = array<i64: 2, 4>}, {transform_indices = @transform_6, window_bounds = array<i64: 2, 256>}, {transform_indices = @transform_7, window_bounds = array<i64: 2, 512>}, {transform_indices = @transform_8, window_bounds = array<i64: 2, 384>}, {transform_indices = @transform_9, window_bounds = array<i64: 2, 512>}, {transform_indices = @transform_10, window_bounds = array<i64: 2, 384>}]} {
    %c0_i32 = arith.constant 0 : i32
    %0 = arith.cmpi eq, %arg0, %c0_i32 : i32
    %1 = arith.extui %0 : i1 to i32
    %c0_i32_0 = arith.constant 0 : i32
    %2 = arith.cmpi ne, %1, %c0_i32_0 : i32
    scf.if %2 {
      %c0_28 = arith.constant 0 : index
      %c0_29 = arith.constant 0 : index
      %24 = vector.load %arg6[%c0_28, %c0_29] : memref<2x4xf32, #tpu.memory_space<vmem>>, vector<2x4xf32>
      %c0_30 = arith.constant 0 : index
      %c0_31 = arith.constant 0 : index
      %25 = vector.load %arg12[%c0_30, %c0_31] : memref<2x4xf32, #tpu.memory_space<vmem>>, vector<2x4xf32>
      tpu.vector_store %arg12[%c0_30, %c0_31], %24 {strides = array<i32>} : memref<2x4xf32, #tpu.memory_space<vmem>>, vector<2x4xf32>,
    } else {
    }
    %c0 = arith.constant 0 : index
    %c0_1 = arith.constant 0 : index
    %3 = vector.load %arg12[%c0, %c0_1] : memref<2x4xf32, #tpu.memory_space<vmem>>, vector<2x4xf32>
    %c0_2 = arith.constant 0 : index
    %c0_3 = arith.constant 0 : index
    %4 = vector.load %arg1[%c0_2, %c0_3] : memref<4x512xf32, #tpu.memory_space<vmem>>, vector<4x512xf32>
    %cst = arith.constant dense<0.000000e+00> : vector<2x512xf32>
    %5 = tpu.matmul %3, %4, %cst {dimension_numbers = #tpu.dot_dimension_numbers<[1], [0], [0], [1], [0, 0, 1, 1], [], []>} : vector<2x4xf32>, vector<4x512xf32>, vector<2x512xf32> -> vector<2x512xf32>
    %c0_4 = arith.constant 0 : index
    %c0_5 = arith.constant 0 : index
    %6 = vector.load %arg7[%c0_4, %c0_5] : memref<2x256xf32, #tpu.memory_space<vmem>>, vector<2x256xf32>
    %c0_6 = arith.constant 0 : index
    %c0_7 = arith.constant 0 : index
    %7 = vector.load %arg2[%c0_6, %c0_7] : memref<256x512xf32, #tpu.memory_space<vmem>>, vector<256x512xf32>
    %cst_8 = arith.constant dense<0.000000e+00> : vector<2x512xf32>
    %8 = tpu.matmul %6, %7, %cst_8 {dimension_numbers = #tpu.dot_dimension_numbers<[1], [0], [0], [1], [0, 0, 1, 1], [], []>} : vector<2x256xf32>, vector<256x512xf32>, vector<2x512xf32> -> vector<2x512xf32>
    %9 = arith.addf %5, %8 : vector<2x512xf32>
    %c0_9 = arith.constant 0 : index
    %c0_10 = arith.constant 0 : index
    %10 = vector.load %arg8[%c0_9, %c0_10] : memref<2x512xf32, #tpu.memory_space<vmem>>, vector<2x512xf32>
    %c0_11 = arith.constant 0 : index
    %c0_12 = arith.constant 0 : index
    %11 = vector.load %arg3[%c0_11, %c0_12] : memref<512x512xf32, #tpu.memory_space<vmem>>, vector<512x512xf32>
    %cst_13 = arith.constant dense<0.000000e+00> : vector<2x512xf32>
    %12 = tpu.matmul %10, %11, %cst_13 {dimension_numbers = #tpu.dot_dimension_numbers<[1], [0], [0], [1], [0, 0, 1, 1], [], []>} : vector<2x512xf32>, vector<512x512xf32>, vector<2x512xf32> -> vector<2x512xf32>
    %13 = arith.addf %9, %12 : vector<2x512xf32>
    %c0_14 = arith.constant 0 : index
    %c0_15 = arith.constant 0 : index
    %14 = vector.load %arg10[%c0_14, %c0_15] : memref<2x512xf32, #tpu.memory_space<vmem>>, vector<2x512xf32>
    tpu.vector_store %arg10[%c0_14, %c0_15], %13 {strides = array<i32>} : memref<2x512xf32, #tpu.memory_space<vmem>>, vector<2x512xf32>,
    %15 = vector.extract_strided_slice %13 {offsets = [0, 508], sizes = [2, 4], strides = [1, 1]} : vector<2x512xf32> to vector<2x4xf32>
    %c0_16 = arith.constant 0 : index
    %c0_17 = arith.constant 0 : index
    %16 = vector.load %arg12[%c0_16, %c0_17] : memref<2x4xf32, #tpu.memory_space<vmem>>, vector<2x4xf32>
    tpu.vector_store %arg12[%c0_16, %c0_17], %15 {strides = array<i32>} : memref<2x4xf32, #tpu.memory_space<vmem>>, vector<2x4xf32>,
    %c0_18 = arith.constant 0 : index
    %c0_19 = arith.constant 0 : index
    %17 = vector.load %arg4[%c0_18, %c0_19] : memref<512x384xf32, #tpu.memory_space<vmem>>, vector<512x384xf32>
    %cst_20 = arith.constant dense<0.000000e+00> : vector<2x384xf32>
    %18 = tpu.matmul %13, %17, %cst_20 {dimension_numbers = #tpu.dot_dimension_numbers<[1], [0], [0], [1], [0, 0, 1, 1], [], []>} : vector<2x512xf32>, vector<512x384xf32>, vector<2x384xf32> -> vector<2x384xf32>
    %c0_21 = arith.constant 0 : index
    %c0_22 = arith.constant 0 : index
    %19 = vector.load %arg9[%c0_21, %c0_22] : memref<2x384xf32, #tpu.memory_space<vmem>>, vector<2x384xf32>
    %c0_23 = arith.constant 0 : index
    %c0_24 = arith.constant 0 : index
    %20 = vector.load %arg5[%c0_23, %c0_24] : memref<384x384xf32, #tpu.memory_space<vmem>>, vector<384x384xf32>
    %cst_25 = arith.constant dense<0.000000e+00> : vector<2x384xf32>
    %21 = tpu.matmul %19, %20, %cst_25 {dimension_numbers = #tpu.dot_dimension_numbers<[1], [0], [0], [1], [0, 0, 1, 1], [], []>} : vector<2x384xf32>, vector<384x384xf32>, vector<2x384xf32> -> vector<2x384xf32>
    %22 = arith.addf %18, %21 : vector<2x384xf32>
    %c0_26 = arith.constant 0 : index
    %c0_27 = arith.constant 0 : index
    %23 = vector.load %arg11[%c0_26, %c0_27] : memref<2x384xf32, #tpu.memory_space<vmem>>, vector<2x384xf32>
    tpu.vector_store %arg11[%c0_26, %c0_27], %22 {strides = array<i32>} : memref<2x384xf32, #tpu.memory_space<vmem>>, vector<2x384xf32>,
    return
  }
  func.func @transform_0(%arg0: i32) -> (i32, i32) {
    %c0_i32 = arith.constant 0 : i32
    %c0_i32_0 = arith.constant 0 : i32
    %c0_i32_1 = arith.constant 0 : i32
    return %c0_i32, %c0_i32_0 : i32, i32
  }
  func.func @transform_1(%arg0: i32) -> (i32, i32) {
    %c0_i32 = arith.constant 0 : i32
    %c0_i32_0 = arith.constant 0 : i32
    %c0_i32_1 = arith.constant 0 : i32
    return %c0_i32, %c0_i32_0 : i32, i32
  }
  func.func @transform_2(%arg0: i32) -> (i32, i32) {
    %c0_i32 = arith.constant 0 : i32
    %c0_i32_0 = arith.constant 0 : i32
    %c0_i32_1 = arith.constant 0 : i32
    return %c0_i32, %c0_i32_0 : i32, i32
  }
  func.func @transform_3(%arg0: i32) -> (i32, i32) {
    %c0_i32 = arith.constant 0 : i32
    %c0_i32_0 = arith.constant 0 : i32
    %c0_i32_1 = arith.constant 0 : i32
    return %c0_i32, %c0_i32_0 : i32, i32
  }
  func.func @transform_4(%arg0: i32) -> (i32, i32) {
    %c0_i32 = arith.constant 0 : i32
    %c0_i32_0 = arith.constant 0 : i32
    %c0_i32_1 = arith.constant 0 : i32
    return %c0_i32, %c0_i32_0 : i32, i32
  }
  func.func @transform_5(%arg0: i32) -> (i32, i32) {
    %c0_i32 = arith.constant 0 : i32
    %c0_i32_0 = arith.constant 0 : i32
    %c0_i32_1 = arith.constant 0 : i32
    return %c0_i32, %c0_i32_0 : i32, i32
  }
  func.func @transform_6(%arg0: i32) -> (i32, i32) {
    %c0_i32 = arith.constant 0 : i32
    %c0_i32_0 = arith.constant 0 : i32
    return %c0_i32, %arg0 : i32, i32
  }
  func.func @transform_7(%arg0: i32) -> (i32, i32) {
    %c0_i32 = arith.constant 0 : i32
    %c0_i32_0 = arith.constant 0 : i32
    return %c0_i32, %arg0 : i32, i32
  }
  func.func @transform_8(%arg0: i32) -> (i32, i32) {
    %c0_i32 = arith.constant 0 : i32
    %c0_i32_0 = arith.constant 0 : i32
    return %c0_i32, %arg0 : i32, i32
  }
  func.func @transform_9(%arg0: i32) -> (i32, i32) {
    %c0_i32 = arith.constant 0 : i32
    %c0_i32_0 = arith.constant 0 : i32
    return %c0_i32, %arg0 : i32, i32
  }
  func.func @transform_10(%arg0: i32) -> (i32, i32) {
    %c0_i32 = arith.constant 0 : i32
    %c0_i32_0 = arith.constant 0 : i32
    return %c0_i32, %arg0 : i32, i32
  }
}

</mosaic_0001>

<llo_original>
// kernel: linear_system_forward.1
$region0: #{linear_system_forward.1}
  #allocation0 [shape = 'u32[]', space=smem, size = 0x4, offset = 0x4, fixed_abs, tag = 'smem constant byte address 0x4 - core index']
  #allocation1 [shape = 'u32[144,128]{1,0:T(1,128)}', space=vmem, size = 0x12000, scoped, tag = 'internal scratch']
  #allocation2 [shape = 'f32[2,4]{1,0:T(2,128)}', space=vmem, size = 0x400, scoped, tag = 'scratch operand']
  %s0 = inlined_call_operand.vmem [shape: f32[4,512], index: 0, kind: input, shape index: {}]
  %s1 = inlined_call_operand.vmem [shape: f32[256,512], index: 1, kind: input, shape index: {}]
  %s2 = inlined_call_operand.vmem [shape: f32[512,512], index: 2, kind: input, shape index: {}]
  %s3 = inlined_call_operand.vmem [shape: f32[512,384], index: 3, kind: input, shape index: {}]
  %s4 = inlined_call_operand.vmem [shape: f32[384,384], index: 4, kind: input, shape index: {}]
  %s5 = inlined_call_operand.vmem [shape: f32[2,4], index: 5, kind: input, shape index: {}]
  %s6 = inlined_call_operand.vmem [shape: f32[2,768], index: 6, kind: input, shape index: {}]
  %s7 = inlined_call_operand.vmem [shape: f32[2,1536], index: 7, kind: input, shape index: {}]
  %s8 = inlined_call_operand.vmem [shape: f32[2,1152], index: 8, kind: input, shape index: {}]
  %s9 = inlined_call_operand.vmem [shape: f32[2,1536], index: 9, kind: output, shape index: {0}]
  %s10 = inlined_call_operand.vmem [shape: f32[2,1152], index: 10, kind: output, shape index: {1}]
  %11 = xla_tuple %s9, %s10
  %s12 = sld [smem:[#allocation0]]
  $region81: #{linear_system_forward.1} parent=0
    _
  %s14 = ssub.s32 1, %s12
  %s15 = scalar_select 0, %s14, %s12
  loop: start=0, step=1, limit=5
  $region2: #{linear_system_forward.1} parent=0 // loop_pre_header
    _
  $region3: #{linear_system_forward.1} parent=0 // loop_header
    %s17 = sphi 0, %s21
    %p18 = scmp.ge.s32.totalorder %s17, 5
    %s25 = sphi 0, %s25
    %s27 = sphi 0, %s25
    %s28 = sphi 0, %s27
    %s42 = sphi 0, %s28
    %s46 = sphi 0, %s46
    %s48 = sphi 0, %s46
    %s49 = sphi 0, %s48
    %s63 = sphi 0, %s49
    %s67 = sphi 0, %s67
    %s69 = sphi 0, %s67
    %s70 = sphi 0, %s69
    %s84 = sphi 0, %s70
    %s88 = sphi 0, %s88
    %s90 = sphi 0, %s88
    %s91 = sphi 0, %s90
    %s105 = sphi 0, %s91
    %s109 = sphi 0, %s109
    %s111 = sphi 0, %s109
    %s112 = sphi 0, %s111
    %s126 = sphi 0, %s112
    %s130 = sphi 0, %s130
    %s132 = sphi 0, %s130
    %s133 = sphi 0, %s132
    %s147 = sphi 0, %s133
    %s153 = sphi 0, %s155
    %s156 = sphi 0, %s153
    %s157 = sphi 0, %s156
    %s173 = sphi 0, %s157
    %s179 = sphi 0, %s181
    %s182 = sphi 0, %s179
    %s183 = sphi 0, %s182
    %s199 = sphi 0, %s183
    %s205 = sphi 0, %s207
    %s208 = sphi 0, %s205
    %s209 = sphi 0, %s208
    %s225 = sphi 0, %s209
    %s231 = sphi 0, %s233
    %s234 = sphi 0, %s231
    %s235 = sphi 0, %s234
    %s251 = sphi 0, %s235
    %s257 = sphi 0, %s259
    %s260 = sphi 0, %s257
    %s261 = sphi 0, %s260
    %s277 = sphi 0, %s261
  $region4: #{linear_system_forward.1} parent=0 // loop_header_branch
    %20 = sbr.rel (%p18) target = $region8
  $region5: #{linear_system_forward.1} parent=0 // loop_body
    %s22 = ssub.s32 %s17, 1
    %s23 = ssub.s32 %s17, 2
    %s24 = sadd.s32 %s17, 1
    %s26 = sadd.s32 %s25, 1
    %p29 = scmp.eq.s32.totalorder %s17, 2
    %p30 = scmp.ne.s32.totalorder %s25, %s27
    %p31 = scmp.eq.s32.totalorder %s17, 0
    %p32 = por %p30, %p31
    %p33 = scmp.ne.s32.totalorder %s25, %s27
    %p34 = scmp.eq.s32.totalorder %s22, 2
    %p35 = por %p33, %p34
    %p36 = scmp.ne.s32.totalorder %s27, %s28
    %p37 = scmp.eq.s32.totalorder %s22, 0
    %p38 = por %p36, %p37
    %p39 = scmp.ne.s32.totalorder %s27, %s28
    %p40 = scmp.eq.s32.totalorder %s23, 2
    %p41 = por %p39, %p40
    %p43 = scmp.ne.s32.totalorder %s28, %s42
    %p44 = scmp.eq.s32.totalorder %s23, 0
    %p45 = por %p43, %p44
    %s47 = sadd.s32 %s46, 1
    %p50 = scmp.eq.s32.totalorder %s17, 2
    %p51 = scmp.ne.s32.totalorder %s46, %s48
    %p52 = scmp.eq.s32.totalorder %s17, 0
    %p53 = por %p51, %p52
    %p54 = scmp.ne.s32.totalorder %s46, %s48
    %p55 = scmp.eq.s32.totalorder %s22, 2
    %p56 = por %p54, %p55
    %p57 = scmp.ne.s32.totalorder %s48, %s49
    %p58 = scmp.eq.s32.totalorder %s22, 0
    %p59 = por %p57, %p58
    %p60 = scmp.ne.s32.totalorder %s48, %s49
    %p61 = scmp.eq.s32.totalorder %s23, 2
    %p62 = por %p60, %p61
    %p64 = scmp.ne.s32.totalorder %s49, %s63
    %p65 = scmp.eq.s32.totalorder %s23, 0
    %p66 = por %p64, %p65
    %s68 = sadd.s32 %s67, 1
    %p71 = scmp.eq.s32.totalorder %s17, 2
    %p72 = scmp.ne.s32.totalorder %s67, %s69
    %p73 = scmp.eq.s32.totalorder %s17, 0
    %p74 = por %p72, %p73
    %p75 = scmp.ne.s32.totalorder %s67, %s69
    %p76 = scmp.eq.s32.totalorder %s22, 2
    %p77 = por %p75, %p76
    %p78 = scmp.ne.s32.totalorder %s69, %s70
    %p79 = scmp.eq.s32.totalorder %s22, 0
    %p80 = por %p78, %p79
    %p81 = scmp.ne.s32.totalorder %s69, %s70
    %p82 = scmp.eq.s32.totalorder %s23, 2
    %p83 = por %p81, %p82
    %p85 = scmp.ne.s32.totalorder %s70, %s84
    %p86 = scmp.eq.s32.totalorder %s23, 0
    %p87 = por %p85, %p86
    %s89 = sadd.s32 %s88, 1
    %p92 = scmp.eq.s32.totalorder %s17, 2
    %p93 = scmp.ne.s32.totalorder %s88, %s90
    %p94 = scmp.eq.s32.totalorder %s17, 0
    %p95 = por %p93, %p94
    %p96 = scmp.ne.s32.totalorder %s88, %s90
    %p97 = scmp.eq.s32.totalorder %s22, 2
    %p98 = por %p96, %p97
    %p99 = scmp.ne.s32.totalorder %s90, %s91
    %p100 = scmp.eq.s32.totalorder %s22, 0
    %p101 = por %p99, %p100
    %p102 = scmp.ne.s32.totalorder %s90, %s91
    %p103 = scmp.eq.s32.totalorder %s23, 2
    %p104 = por %p102, %p103
    %p106 = scmp.ne.s32.totalorder %s91, %s105
    %p107 = scmp.eq.s32.totalorder %s23, 0
    %p108 = por %p106, %p107
    %s110 = sadd.s32 %s109, 1
    %p113 = scmp.eq.s32.totalorder %s17, 2
    %p114 = scmp.ne.s32.totalorder %s109, %s111
    %p115 = scmp.eq.s32.totalorder %s17, 0
    %p116 = por %p114, %p115
    %p117 = scmp.ne.s32.totalorder %s109, %s111
    %p118 = scmp.eq.s32.totalorder %s22, 2
    %p119 = por %p117, %p118
    %p120 = scmp.ne.s32.totalorder %s111, %s112
    %p121 = scmp.eq.s32.totalorder %s22, 0
    %p122 = por %p120, %p121
    %p123 = scmp.ne.s32.totalorder %s111, %s112
    %p124 = scmp.eq.s32.totalorder %s23, 2
    %p125 = por %p123, %p124
    %p127 = scmp.ne.s32.totalorder %s112, %s126
    %p128 = scmp.eq.s32.totalorder %s23, 0
    %p129 = por %p127, %p128
    %s131 = sadd.s32 %s130, 1
    %p134 = scmp.eq.s32.totalorder %s17, 2
    %p135 = scmp.ne.s32.totalorder %s130, %s132
    %p136 = scmp.eq.s32.totalorder %s17, 0
    %p137 = por %p135, %p136
    %p138 = scmp.ne.s32.totalorder %s130, %s132
    %p139 = scmp.eq.s32.totalorder %s22, 2
    %p140 = por %p138, %p139
    %p141 = scmp.ne.s32.totalorder %s132, %s133
    %p142 = scmp.eq.s32.totalorder %s22, 0
    %p143 = por %p141, %p142
    %p144 = scmp.ne.s32.totalorder %s132, %s133
    %p145 = scmp.eq.s32.totalorder %s23, 2
    %p146 = por %p144, %p145
    %p148 = scmp.ne.s32.totalorder %s133, %s147
    %p149 = scmp.eq.s32.totalorder %s23, 0
    %p150 = por %p148, %p149
    %s151 = ssub.s32 %s17, %s24
    %p152 = scmp.eq.s32.totalorder %s151, 0
    %s154 = sadd.s32 %s153, 1
    %s155 = scalar_select %p152, %s153, %s154
    %p158 = pneg %p152
    %p159 = scmp.eq.s32.totalorder %s17, 2
    %p160 = por %p158, %p159
    %p161 = scmp.ne.s32.totalorder %s153, %s156
    %p162 = scmp.eq.s32.totalorder %s17, 0
    %p163 = por %p161, %p162
    %p164 = scmp.ne.s32.totalorder %s153, %s156
    %p165 = scmp.eq.s32.totalorder %s22, 2
    %p166 = por %p164, %p165
    %p167 = scmp.ne.s32.totalorder %s156, %s157
    %p168 = scmp.eq.s32.totalorder %s22, 0
    %p169 = por %p167, %p168
    %p170 = scmp.ne.s32.totalorder %s156, %s157
    %p171 = scmp.eq.s32.totalorder %s23, 2
    %p172 = por %p170, %p171
    %p174 = scmp.ne.s32.totalorder %s157, %s173
    %p175 = scmp.eq.s32.totalorder %s23, 0
    %p176 = por %p174, %p175
    %s177 = ssub.s32 %s17, %s24
    %p178 = scmp.eq.s32.totalorder %s177, 0
    %s180 = sadd.s32 %s179, 1
    %s181 = scalar_select %p178, %s179, %s180
    %p184 = pneg %p178
    %p185 = scmp.eq.s32.totalorder %s17, 2
    %p186 = por %p184, %p185
    %p187 = scmp.ne.s32.totalorder %s179, %s182
    %p188 = scmp.eq.s32.totalorder %s17, 0
    %p189 = por %p187, %p188
    %p190 = scmp.ne.s32.totalorder %s179, %s182
    %p191 = scmp.eq.s32.totalorder %s22, 2
    %p192 = por %p190, %p191
    %p193 = scmp.ne.s32.totalorder %s182, %s183
    %p194 = scmp.eq.s32.totalorder %s22, 0
    %p195 = por %p193, %p194
    %p196 = scmp.ne.s32.totalorder %s182, %s183
    %p197 = scmp.eq.s32.totalorder %s23, 2
    %p198 = por %p196, %p197
    %p200 = scmp.ne.s32.totalorder %s183, %s199
    %p201 = scmp.eq.s32.totalorder %s23, 0
    %p202 = por %p200, %p201
    %s203 = ssub.s32 %s17, %s24
    %p204 = scmp.eq.s32.totalorder %s203, 0
    %s206 = sadd.s32 %s205, 1
    %s207 = scalar_select %p204, %s205, %s206
    %p210 = pneg %p204
    %p211 = scmp.eq.s32.totalorder %s17, 2
    %p212 = por %p210, %p211
    %p213 = scmp.ne.s32.totalorder %s205, %s208
    %p214 = scmp.eq.s32.totalorder %s17, 0
    %p215 = por %p213, %p214
    %p216 = scmp.ne.s32.totalorder %s205, %s208
    %p217 = scmp.eq.s32.totalorder %s22, 2
    %p218 = por %p216, %p217
    %p219 = scmp.ne.s32.totalorder %s208, %s209
    %p220 = scmp.eq.s32.totalorder %s22, 0
    %p221 = por %p219, %p220
    %p222 = scmp.ne.s32.totalorder %s208, %s209
    %p223 = scmp.eq.s32.totalorder %s23, 2
    %p224 = por %p222, %p223
    %p226 = scmp.ne.s32.totalorder %s209, %s225
    %p227 = scmp.eq.s32.totalorder %s23, 0
    %p228 = por %p226, %p227
    %s229 = ssub.s32 %s17, %s24
    %p230 = scmp.eq.s32.totalorder %s229, 0
    %s232 = sadd.s32 %s231, 1
    %s233 = scalar_select %p230, %s231, %s232
    %p236 = pneg %p230
    %p237 = scmp.eq.s32.totalorder %s17, 2
    %p238 = por %p236, %p237
    %p239 = scmp.ne.s32.totalorder %s231, %s234
    %p240 = scmp.eq.s32.totalorder %s17, 0
    %p241 = por %p239, %p240
    %p242 = scmp.ne.s32.totalorder %s231, %s234
    %p243 = scmp.eq.s32.totalorder %s22, 2
    %p244 = por %p242, %p243
    %p245 = scmp.ne.s32.totalorder %s234, %s235
    %p246 = scmp.eq.s32.totalorder %s22, 0
    %p247 = por %p245, %p246
    %p248 = scmp.ne.s32.totalorder %s234, %s235
    %p249 = scmp.eq.s32.totalorder %s23, 2
    %p250 = por %p248, %p249
    %p252 = scmp.ne.s32.totalorder %s235, %s251
    %p253 = scmp.eq.s32.totalorder %s23, 0
    %p254 = por %p252, %p253
    %s255 = ssub.s32 %s17, %s24
    %p256 = scmp.eq.s32.totalorder %s255, 0
    %s258 = sadd.s32 %s257, 1
    %s259 = scalar_select %p256, %s257, %s258
    %p262 = pneg %p256
    %p263 = scmp.eq.s32.totalorder %s17, 2
    %p264 = por %p262, %p263
    %p265 = scmp.ne.s32.totalorder %s257, %s260
    %p266 = scmp.eq.s32.totalorder %s17, 0
    %p267 = por %p265, %p266
    %p268 = scmp.ne.s32.totalorder %s257, %s260
    %p269 = scmp.eq.s32.totalorder %s22, 2
    %p270 = por %p268, %p269
    %p271 = scmp.ne.s32.totalorder %s260, %s261
    %p272 = scmp.eq.s32.totalorder %s22, 0
    %p273 = por %p271, %p272
    %p274 = scmp.ne.s32.totalorder %s260, %s261
    %p275 = scmp.eq.s32.totalorder %s23, 2
    %p276 = por %p274, %p275
    %p278 = scmp.ne.s32.totalorder %s261, %s277
    %p279 = scmp.eq.s32.totalorder %s23, 0
    %p280 = por %p278, %p279
    %p281 = scmp.le.s32.totalorder 1, %s17
    %p282 = scmp.lt.s32.totalorder %s17, 4
    %p283 = pnand %p281, %p282
    %p284 = pneg %p283
    // Predicated region
    $region9: #{linear_system_forward.1} parent=5 // pred_check
      _
    $region10: #{linear_system_forward.1} parent=5 // pred_check_branch
      %286 = sbr.rel (%p283) target = $region12
    $region11: #{linear_system_forward.1} parent=5 // pred_region
      %s287 = ssub.s32 %s17, 1
      // Predicated region
      $region13: #{linear_system_forward.1} parent=11 // pred_check
        %p288 = pneg %p38
      $region14: #{linear_system_forward.1} parent=11 // pred_check_branch
        %290 = sbr.rel (%p288) target = $region16
      $region15: #{linear_system_forward.1} parent=11 // pred_region
        _
      $region16: #{linear_system_forward.1} parent=11 // pred_fallthru
        _
      // Predicated region
      $region17: #{linear_system_forward.1} parent=11 // pred_check
        %p291 = pneg %p59
      $region18: #{linear_system_forward.1} parent=11 // pred_check_branch
        %293 = sbr.rel (%p291) target = $region20
      $region19: #{linear_system_forward.1} parent=11 // pred_region
        _
      $region20: #{linear_system_forward.1} parent=11 // pred_fallthru
        _
      // Predicated region
      $region21: #{linear_system_forward.1} parent=11 // pred_check
        %p294 = pneg %p80
      $region22: #{linear_system_forward.1} parent=11 // pred_check_branch
        %296 = sbr.rel (%p294) target = $region24
      $region23: #{linear_system_forward.1} parent=11 // pred_region
        _
      $region24: #{linear_system_forward.1} parent=11 // pred_fallthru
        _
      // Predicated region
      $region25: #{linear_system_forward.1} parent=11 // pred_check
        %p297 = pneg %p101
      $region26: #{linear_system_forward.1} parent=11 // pred_check_branch
        %299 = sbr.rel (%p297) target = $region28
      $region27: #{linear_system_forward.1} parent=11 // pred_region
        _
      $region28: #{linear_system_forward.1} parent=11 // pred_fallthru
        _
      // Predicated region
      $region29: #{linear_system_forward.1} parent=11 // pred_check
        %p300 = pneg %p122
      $region30: #{linear_system_forward.1} parent=11 // pred_check_branch
        %302 = sbr.rel (%p300) target = $region32
      $region31: #{linear_system_forward.1} parent=11 // pred_region
        _
      $region32: #{linear_system_forward.1} parent=11 // pred_fallthru
        _
      // Predicated region
      $region33: #{linear_system_forward.1} parent=11 // pred_check
        %p303 = pneg %p143
      $region34: #{linear_system_forward.1} parent=11 // pred_check_branch
        %305 = sbr.rel (%p303) target = $region36
      $region35: #{linear_system_forward.1} parent=11 // pred_region
        _
      $region36: #{linear_system_forward.1} parent=11 // pred_fallthru
        _
    $region12: #{linear_system_forward.1} parent=5 // pred_fallthru
      _
    %p306 = scmp.lt.s32.totalorder %s17, 3
    // Predicated region
    $region37: #{linear_system_forward.1} parent=5 // pred_check
      %p307 = pneg %p306
    $region38: #{linear_system_forward.1} parent=5 // pred_check_branch
      %309 = sbr.rel (%p307) target = $region40
    $region39: #{linear_system_forward.1} parent=5 // pred_region
      // Predicated region
      $region41: #{linear_system_forward.1} parent=39 // pred_check
        %p310 = pneg %p163
      $region42: #{linear_system_forward.1} parent=39 // pred_check_branch
        %312 = sbr.rel (%p310) target = $region44
      $region43: #{linear_system_forward.1} parent=39 // pred_region
        %s313 = smul.u32 2, %s17
        %p314 = scmp.lt.s32.totalorder %s313, 5
        %s315 = scalar_select %p314, %s313, 5
        %s316 = smul.addr %s315, 2
        %s317 = scalar_lea.vmem %s6, %s316
        %s318 = smul.u32 2, %s17
      $region44: #{linear_system_forward.1} parent=39 // pred_fallthru
        _
      // Predicated region
      $region45: #{linear_system_forward.1} parent=39 // pred_check
        %p319 = pneg %p189
      $region46: #{linear_system_forward.1} parent=39 // pred_check_branch
        %321 = sbr.rel (%p319) target = $region48
      $region47: #{linear_system_forward.1} parent=39 // pred_region
        %s322 = smul.u32 4, %s17
        %p323 = scmp.lt.s32.totalorder %s322, 11
        %s324 = scalar_select %p323, %s322, 11
        %s325 = smul.addr %s324, 2
        %s326 = scalar_lea.vmem %s7, %s325
        %s327 = smul.u32 4, %s17
      $region48: #{linear_system_forward.1} parent=39 // pred_fallthru
        _
      // Predicated region
      $region49: #{linear_system_forward.1} parent=39 // pred_check
        %p328 = pneg %p215
      $region50: #{linear_system_forward.1} parent=39 // pred_check_branch
        %330 = sbr.rel (%p328) target = $region52
      $region51: #{linear_system_forward.1} parent=39 // pred_region
        %s331 = smul.u32 3, %s17
        %p332 = scmp.lt.s32.totalorder %s331, 8
        %s333 = scalar_select %p332, %s331, 8
        %s334 = smul.addr %s333, 2
        %s335 = scalar_lea.vmem %s8, %s334
        %s336 = smul.u32 3, %s17
      $region52: #{linear_system_forward.1} parent=39 // pred_fallthru
        _
    $region40: #{linear_system_forward.1} parent=5 // pred_fallthru
      _
    %p337 = scmp.le.s32.totalorder 1, %s17
    %p338 = scmp.lt.s32.totalorder %s17, 4
    %p339 = pnand %p337, %p338
    %p340 = pneg %p339
    // Predicated region
    $region53: #{linear_system_forward.1} parent=5 // pred_check
      _
    $region54: #{linear_system_forward.1} parent=5 // pred_check_branch
      %342 = sbr.rel (%p339) target = $region56
    $region55: #{linear_system_forward.1} parent=5 // pred_region
      %s343 = ssub.s32 %s17, 1
      %p344 = pneg %p38
      %p345 = pneg %p35
      %p346 = pneg %p59
      %p347 = pneg %p56
      %p348 = pneg %p80
      %p349 = pneg %p77
      %p350 = pneg %p101
      %p351 = pneg %p98
      %p352 = pneg %p122
      %p353 = pneg %p119
      %p354 = pneg %p143
      %p355 = pneg %p140
      %s356 = smul.u32 2, %s22
      %p357 = scmp.lt.s32.totalorder %s356, 5
      %s358 = scalar_select %p357, %s356, 5
      %s359 = smul.addr %s358, 2
      %s360 = scalar_lea.vmem %s6, %s359
      %p361 = pneg %p169
      %p362 = pneg %p166
      %s363 = smul.u32 4, %s22
      %p364 = scmp.lt.s32.totalorder %s363, 11
      %s365 = scalar_select %p364, %s363, 11
      %s366 = smul.addr %s365, 2
      %s367 = scalar_lea.vmem %s7, %s366
      %p368 = pneg %p195
      %p369 = pneg %p192
      %s370 = smul.u32 3, %s22
      %p371 = scmp.lt.s32.totalorder %s370, 8
      %s372 = scalar_select %p371, %s370, 8
      %s373 = smul.addr %s372, 2
      %s374 = scalar_lea.vmem %s8, %s373
      %p375 = pneg %p221
      %p376 = pneg %p218
      %p377 = pneg %p247
      %p378 = pneg %p244
      %s379 = smul.u32 4, %s22
      %p380 = scmp.lt.s32.totalorder %s379, 11
      %s381 = scalar_select %p380, %s379, 11
      %s382 = smul.addr %s381, 2
      %s383 = scalar_lea.vmem %s9, %s382
      %p384 = pneg %p273
      %p385 = pneg %p270
      %s386 = smul.u32 3, %s22
      %p387 = scmp.lt.s32.totalorder %s386, 8
      %s388 = scalar_select %p387, %s386, 8
      %s389 = smul.addr %s388, 2
      %s390 = scalar_lea.vmem %s10, %s389
      %s391 = smul.u32 2, %s22
      %p392 = scmp.lt.s32.totalorder %s391, 5
      %s393 = scalar_select %p392, %s391, 5
      %s394 = smul.addr %s393, 2
      %s395 = scalar_lea.vmem %s6, %s394
      %s396 = smul.u32 2, %s22
      %s397 = smul.u32 4, %s22
      %p398 = scmp.lt.s32.totalorder %s397, 11
      %s399 = scalar_select %p398, %s397, 11
      %s400 = smul.addr %s399, 2
      %s401 = scalar_lea.vmem %s7, %s400
      %s402 = smul.u32 4, %s22
      %s403 = smul.u32 3, %s22
      %p404 = scmp.lt.s32.totalorder %s403, 8
      %s405 = scalar_select %p404, %s403, 8
      %s406 = smul.addr %s405, 2
      %s407 = scalar_lea.vmem %s8, %s406
      %s408 = smul.u32 3, %s22
      %s409 = smul.u32 4, %s22
      %p410 = scmp.lt.s32.totalorder %s409, 11
      %s411 = scalar_select %p410, %s409, 11
      %s412 = smul.addr %s411, 2
      %s413 = scalar_lea.vmem %s9, %s412
      %s414 = smul.u32 4, %s22
      %s415 = smul.u32 3, %s22
      %p416 = scmp.lt.s32.totalorder %s415, 8
      %s417 = scalar_select %p416, %s415, 8
      %s418 = smul.addr %s417, 2
      %s419 = scalar_lea.vmem %s10, %s418
      %s420 = smul.u32 3, %s22
      %p421 = scmp.eq.s32.totalorder %s22, 0
      // Predicated region
      $region57: #{linear_system_forward.1} parent=55 // pred_check
        %p422 = pneg %p421
      $region58: #{linear_system_forward.1} parent=55 // pred_check_branch
        %424 = sbr.rel (%p422) target = $region60
      $region59: #{linear_system_forward.1} parent=55 // pred_region
        %v425 = vld [vmem:[%s5] sm:$0x3]
        %vm426 = vcmask 25600
        %427 = vst.msk [vmem:[#allocation2] sm:$0x3] %vm426, %v425
      $region60: #{linear_system_forward.1} parent=55 // pred_fallthru
        _
      %v428 = vld [vmem:[#allocation2] sm:$0x3]
      %v429 = vld [vmem:[%s0] sm:$0xff]
      %v430 = vld [vmem:[%s0 + $0x8] sm:$0xff]
      %v431 = vld [vmem:[%s395] sm:$0xf]
      %v432 = vld [vmem:[%s1] sm:$0xff]
      %v433 = vld [vmem:[%s1 + $0x8] sm:$0xff]
      %v434 = vld [vmem:[%s1 + $0x10] sm:$0xff]
      %v435 = vld [vmem:[%s1 + $0x18] sm:$0xff]
      %v436 = vld [vmem:[%s1 + $0x20] sm:$0xff]
      %v437 = vld [vmem:[%s1 + $0x28] sm:$0xff]
      %v438 = vld [vmem:[%s1 + $0x30] sm:$0xff]
      %v439 = vld [vmem:[%s1 + $0x38] sm:$0xff]
      %v440 = vld [vmem:[%s1 + $0x40] sm:$0xff]
      %v441 = vld [vmem:[%s1 + $0x48] sm:$0xff]
      %v442 = vld [vmem:[%s1 + $0x50] sm:$0xff]
      %v443 = vld [vmem:[%s1 + $0x58] sm:$0xff]
      %v444 = vld [vmem:[%s1 + $0x60] sm:$0xff]
      %v445 = vld [vmem:[%s1 + $0x68] sm:$0xff]
      %v446 = vld [vmem:[%s1 + $0x70] sm:$0xff]
      %v447 = vld [vmem:[%s1 + $0x78] sm:$0xff]
      %v448 = vld [vmem:[%s1 + $0x80] sm:$0xff]
      %v449 = vld [vmem:[%s1 + $0x88] sm:$0xff]
      %v450 = vld [vmem:[%s1 + $0x90] sm:$0xff]
      %v451 = vld [vmem:[%s1 + $0x98] sm:$0xff]
      %v452 = vld [vmem:[%s1 + $0xa0] sm:$0xff]
      %v453 = vld [vmem:[%s1 + $0xa8] sm:$0xff]
      %v454 = vld [vmem:[%s1 + $0xb0] sm:$0xff]
      %v455 = vld [vmem:[%s1 + $0xb8] sm:$0xff]
      %v456 = vld [vmem:[%s1 + $0xc0] sm:$0xff]
      %v457 = vld [vmem:[%s1 + $0xc8] sm:$0xff]
      %v458 = vld [vmem:[%s1 + $0xd0] sm:$0xff]
      %v459 = vld [vmem:[%s1 + $0xd8] sm:$0xff]
      %v460 = vld [vmem:[%s1 + $0xe0] sm:$0xff]
      %v461 = vld [vmem:[%s1 + $0xe8] sm:$0xff]
      %v462 = vld [vmem:[%s1 + $0xf0] sm:$0xff]
      %v463 = vld [vmem:[%s1 + $0xf8] sm:$0xff]
      %v464 = vld [vmem:[%s1 + $0x100] sm:$0xff]
      %v465 = vld [vmem:[%s1 + $0x108] sm:$0xff]
      %v466 = vld [vmem:[%s1 + $0x110] sm:$0xff]
      %v467 = vld [vmem:[%s1 + $0x118] sm:$0xff]
      %v468 = vld [vmem:[%s1 + $0x120] sm:$0xff]
      %v469 = vld [vmem:[%s1 + $0x128] sm:$0xff]
      %v470 = vld [vmem:[%s1 + $0x130] sm:$0xff]
      %v471 = vld [vmem:[%s1 + $0x138] sm:$0xff]
      %v472 = vld [vmem:[%s1 + $0x140] sm:$0xff]
      %v473 = vld [vmem:[%s1 + $0x148] sm:$0xff]
      %v474 = vld [vmem:[%s1 + $0x150] sm:$0xff]
      %v475 = vld [vmem:[%s1 + $0x158] sm:$0xff]
      %v476 = vld [vmem:[%s1 + $0x160] sm:$0xff]
      %v477 = vld [vmem:[%s1 + $0x168] sm:$0xff]
      %v478 = vld [vmem:[%s1 + $0x170] sm:$0xff]
      %v479 = vld [vmem:[%s1 + $0x178] sm:$0xff]
      %v480 = vld [vmem:[%s1 + $0x180] sm:$0xff]
      %v481 = vld [vmem:[%s1 + $0x188] sm:$0xff]
      %v482 = vld [vmem:[%s1 + $0x190] sm:$0xff]
      %v483 = vld [vmem:[%s1 + $0x198] sm:$0xff]
      %v484 = vld [vmem:[%s1 + $0x1a0] sm:$0xff]
      %v485 = vld [vmem:[%s1 + $0x1a8] sm:$0xff]
      %v486 = vld [vmem:[%s1 + $0x1b0] sm:$0xff]
      %v487 = vld [vmem:[%s1 + $0x1b8] sm:$0xff]
      %v488 = vld [vmem:[%s1 + $0x1c0] sm:$0xff]
      %v489 = vld [vmem:[%s1 + $0x1c8] sm:$0xff]
      %v490 = vld [vmem:[%s1 + $0x1d0] sm:$0xff]
      %v491 = vld [vmem:[%s1 + $0x1d8] sm:$0xff]
      %v492 = vld [vmem:[%s1 + $0x1e0] sm:$0xff]
      %v493 = vld [vmem:[%s1 + $0x1e8] sm:$0xff]
      %v494 = vld [vmem:[%s1 + $0x1f0] sm:$0xff]
      %v495 = vld [vmem:[%s1 + $0x1f8] sm:$0xff]
      %v496 = vld [vmem:[%s1 + $0x200] sm:$0xff]
      %v497 = vld [vmem:[%s1 + $0x208] sm:$0xff]
      %v498 = vld [vmem:[%s1 + $0x210] sm:$0xff]
      %v499 = vld [vmem:[%s1 + $0x218] sm:$0xff]
      %v500 = vld [vmem:[%s1 + $0x220] sm:$0xff]
      %v501 = vld [vmem:[%s1 + $0x228] sm:$0xff]
      %v502 = vld [vmem:[%s1 + $0x230] sm:$0xff]
      %v503 = vld [vmem:[%s1 + $0x238] sm:$0xff]
      %v504 = vld [vmem:[%s1 + $0x240] sm:$0xff]
      %v505 = vld [vmem:[%s1 + $0x248] sm:$0xff]
      %v506 = vld [vmem:[%s1 + $0x250] sm:$0xff]
      %v507 = vld [vmem:[%s1 + $0x258] sm:$0xff]
      %v508 = vld [vmem:[%s1 + $0x260] sm:$0xff]
      %v509 = vld [vmem:[%s1 + $0x268] sm:$0xff]
      %v510 = vld [vmem:[%s1 + $0x270] sm:$0xff]
      %v511 = vld [vmem:[%s1 + $0x278] sm:$0xff]
      %v512 = vld [vmem:[%s1 + $0x280] sm:$0xff]
      %v513 = vld [vmem:[%s1 + $0x288] sm:$0xff]
      %v514 = vld [vmem:[%s1 + $0x290] sm:$0xff]
      %v515 = vld [vmem:[%s1 + $0x298] sm:$0xff]
      %v516 = vld [vmem:[%s1 + $0x2a0] sm:$0xff]
      %v517 = vld [vmem:[%s1 + $0x2a8] sm:$0xff]
      %v518 = vld [vmem:[%s1 + $0x2b0] sm:$0xff]
      %v519 = vld [vmem:[%s1 + $0x2b8] sm:$0xff]
      %v520 = vld [vmem:[%s1 + $0x2c0] sm:$0xff]
      %v521 = vld [vmem:[%s1 + $0x2c8] sm:$0xff]
      %v522 = vld [vmem:[%s1 + $0x2d0] sm:$0xff]
      %v523 = vld [vmem:[%s1 + $0x2d8] sm:$0xff]
      %v524 = vld [vmem:[%s1 + $0x2e0] sm:$0xff]
      %v525 = vld [vmem:[%s1 + $0x2e8] sm:$0xff]
      %v526 = vld [vmem:[%s1 + $0x2f0] sm:$0xff]
      %v527 = vld [vmem:[%s1 + $0x2f8] sm:$0xff]
      %v528 = vld [vmem:[%s1 + $0x300] sm:$0xff]
      %v529 = vld [vmem:[%s1 + $0x308] sm:$0xff]
      %v530 = vld [vmem:[%s1 + $0x310] sm:$0xff]
      %v531 = vld [vmem:[%s1 + $0x318] sm:$0xff]
      %v532 = vld [vmem:[%s1 + $0x320] sm:$0xff]
      %v533 = vld [vmem:[%s1 + $0x328] sm:$0xff]
      %v534 = vld [vmem:[%s1 + $0x330] sm:$0xff]
      %v535 = vld [vmem:[%s1 + $0x338] sm:$0xff]
      %v536 = vld [vmem:[%s1 + $0x340] sm:$0xff]
      %v537 = vld [vmem:[%s1 + $0x348] sm:$0xff]
      %v538 = vld [vmem:[%s1 + $0x350] sm:$0xff]
      %v539 = vld [vmem:[%s1 + $0x358] sm:$0xff]
      %v540 = vld [vmem:[%s1 + $0x360] sm:$0xff]
      %v541 = vld [vmem:[%s1 + $0x368] sm:$0xff]
      %v542 = vld [vmem:[%s1 + $0x370] sm:$0xff]
      %v543 = vld [vmem:[%s1 + $0x378] sm:$0xff]
      %v544 = vld [vmem:[%s1 + $0x380] sm:$0xff]
      %v545 = vld [vmem:[%s1 + $0x388] sm:$0xff]
      %v546 = vld [vmem:[%s1 + $0x390] sm:$0xff]
      %v547 = vld [vmem:[%s1 + $0x398] sm:$0xff]
      %v548 = vld [vmem:[%s1 + $0x3a0] sm:$0xff]
      %v549 = vld [vmem:[%s1 + $0x3a8] sm:$0xff]
      %v550 = vld [vmem:[%s1 + $0x3b0] sm:$0xff]
      %v551 = vld [vmem:[%s1 + $0x3b8] sm:$0xff]
      %v552 = vld [vmem:[%s1 + $0x3c0] sm:$0xff]
      %v553 = vld [vmem:[%s1 + $0x3c8] sm:$0xff]
      %v554 = vld [vmem:[%s1 + $0x3d0] sm:$0xff]
      %v555 = vld [vmem:[%s1 + $0x3d8] sm:$0xff]
      %v556 = vld [vmem:[%s1 + $0x3e0] sm:$0xff]
      %v557 = vld [vmem:[%s1 + $0x3e8] sm:$0xff]
      %v558 = vld [vmem:[%s1 + $0x3f0] sm:$0xff]
      %v559 = vld [vmem:[%s1 + $0x3f8] sm:$0xff]
      %v562 = vunpack.c.l.s4 1983009808
      %v563 = vunpack.c.0.s8 %v562
      %v564 = vlaneseq
      %v565 = vshrl.u32 %v564, 7
      %v566 = vsub.s32 %v563, %v565
      %v567 = vrot.slane %v431, %v566
      %v568 = vcombine.high %v567, %v567
      %571 = vmatprep.subr.mxu0 %v433
      %572 = vmatpush1.msra.mxu0 %v432
      %573 = vmatprep.subr.mxu0 %v437
      %574 = vmatpush1.msra.mxu0 %v436
      %575 = vmatprep.subr.mxu0 %v441
      %576 = vmatpush1.msra.mxu0 %v440
      %577 = vmatprep.subr.mxu0 %v445
      %578 = vmatpush1.msra.mxu0 %v444
      %579 = vmatprep.subr.mxu0 %v449
      %580 = vmatpush1.msra.mxu0 %v448
      %581 = vmatprep.subr.mxu0 %v453
      %582 = vmatpush1.msra.mxu0 %v452
      %583 = vmatprep.subr.mxu0 %v457
      %584 = vmatpush1.msra.mxu0 %v456
      %585 = vmatprep.subr.mxu0 %v461
      %586 = vmatpush1.msra.mxu0 %v460
      %587 = vmatprep.subr.mxu0 %v465
      %588 = vmatpush1.msra.mxu0 %v464
      %589 = vmatprep.subr.mxu0 %v469
      %590 = vmatpush1.msra.mxu0 %v468
      %591 = vmatprep.subr.mxu0 %v473
      %592 = vmatpush1.msra.mxu0 %v472
      %593 = vmatprep.subr.mxu0 %v477
      %594 = vmatpush1.msra.mxu0 %v476
      %595 = vmatprep.subr.mxu0 %v481
      %596 = vmatpush1.msra.mxu0 %v480
      %597 = vmatprep.subr.mxu0 %v485
      %598 = vmatpush1.msra.mxu0 %v484
      %599 = vmatprep.subr.mxu0 %v489
      %600 = vmatpush1.msra.mxu0 %v488
      %601 = vmatprep.subr.mxu0 %v493
      %602 = vmatpush1.msra.mxu0 %v492
      %603 = vmatprep.subr.mxu0 %v497
      %604 = vmatpush1.msra.mxu0 %v496
      %605 = vmatprep.subr.mxu0 %v501
      %606 = vmatpush1.msra.mxu0 %v500
      %607 = vmatprep.subr.mxu0 %v505
      %608 = vmatpush1.msra.mxu0 %v504
      %609 = vmatprep.subr.mxu0 %v509
      %610 = vmatpush1.msra.mxu0 %v508
      %611 = vmatprep.subr.mxu0 %v513
      %612 = vmatpush1.msra.mxu0 %v512
      %613 = vmatprep.subr.mxu0 %v517
      %614 = vmatpush1.msra.mxu0 %v516
      %615 = vmatprep.subr.mxu0 %v521
      %616 = vmatpush1.msra.mxu0 %v520
      %617 = vmatprep.subr.mxu0 %v525
      %618 = vmatpush1.msra.mxu0 %v524
      %619 = vmatprep.subr.mxu0 %v529
      %620 = vmatpush1.msra.mxu0 %v528
      %621 = vmatprep.subr.mxu0 %v533
      %622 = vmatpush1.msra.mxu0 %v532
      %623 = vmatprep.subr.mxu0 %v537
      %624 = vmatpush1.msra.mxu0 %v536
      %625 = vmatprep.subr.mxu0 %v541
      %626 = vmatpush1.msra.mxu0 %v540
      %627 = vmatprep.subr.mxu0 %v545
      %628 = vmatpush1.msra.mxu0 %v544
      %629 = vmatprep.subr.mxu0 %v549
      %630 = vmatpush1.msra.mxu0 %v548
      %631 = vmatprep.subr.mxu0 %v553
      %632 = vmatpush1.msra.mxu0 %v552
      %633 = vmatprep.subr.mxu0 %v557
      %634 = vmatpush1.msra.mxu0 %v556
      %635 = vmatprep.mubr.f32.mxu0 %v568
      %636 = vmatmul.mubr.f32.gmra.mrb[0].mxu0 %v567
      %v637 = vpop.f32.mrb[0].mxu0
      %v638 = vadd.f32 0.0, %v637
      %v639 = vpop.f32.mrb[0].mxu0
      %v640 = vadd.f32 0.0, %v639
      %641 = vdwg.mxu0
      %642 = vmatprep.subr.mxu0 %v435
      %643 = vmatpush1.msra.mxu0 %v434
      %644 = vmatprep.subr.mxu0 %v439
      %645 = vmatpush1.msra.mxu0 %v438
      %646 = vmatprep.subr.mxu0 %v443
      %647 = vmatpush1.msra.mxu0 %v442
      %648 = vmatprep.subr.mxu0 %v447
      %649 = vmatpush1.msra.mxu0 %v446
      %650 = vmatprep.subr.mxu0 %v451
      %651 = vmatpush1.msra.mxu0 %v450
      %652 = vmatprep.subr.mxu0 %v455
      %653 = vmatpush1.msra.mxu0 %v454
      %654 = vmatprep.subr.mxu0 %v459
      %655 = vmatpush1.msra.mxu0 %v458
      %656 = vmatprep.subr.mxu0 %v463
      %657 = vmatpush1.msra.mxu0 %v462
      %658 = vmatprep.subr.mxu0 %v467
      %659 = vmatpush1.msra.mxu0 %v466
      %660 = vmatprep.subr.mxu0 %v471
      %661 = vmatpush1.msra.mxu0 %v470
      %662 = vmatprep.subr.mxu0 %v475
      %663 = vmatpush1.msra.mxu0 %v474
      %664 = vmatprep.subr.mxu0 %v479
      %665 = vmatpush1.msra.mxu0 %v478
      %666 = vmatprep.subr.mxu0 %v483
      %667 = vmatpush1.msra.mxu0 %v482
      %668 = vmatprep.subr.mxu0 %v487
      %669 = vmatpush1.msra.mxu0 %v486
      %670 = vmatprep.subr.mxu0 %v491
      %671 = vmatpush1.msra.mxu0 %v490
      %672 = vmatprep.subr.mxu0 %v495
      %673 = vmatpush1.msra.mxu0 %v494
      %674 = vmatprep.subr.mxu0 %v499
      %675 = vmatpush1.msra.mxu0 %v498
      %676 = vmatprep.subr.mxu0 %v503
      %677 = vmatpush1.msra.mxu0 %v502
      %678 = vmatprep.subr.mxu0 %v507
      %679 = vmatpush1.msra.mxu0 %v506
      %680 = vmatprep.subr.mxu0 %v511
      %681 = vmatpush1.msra.mxu0 %v510
      %682 = vmatprep.subr.mxu0 %v515
      %683 = vmatpush1.msra.mxu0 %v514
      %684 = vmatprep.subr.mxu0 %v519
      %685 = vmatpush1.msra.mxu0 %v518
      %686 = vmatprep.subr.mxu0 %v523
      %687 = vmatpush1.msra.mxu0 %v522
      %688 = vmatprep.subr.mxu0 %v527
      %689 = vmatpush1.msra.mxu0 %v526
      %690 = vmatprep.subr.mxu0 %v531
      %691 = vmatpush1.msra.mxu0 %v530
      %692 = vmatprep.subr.mxu0 %v535
      %693 = vmatpush1.msra.mxu0 %v534
      %694 = vmatprep.subr.mxu0 %v539
      %695 = vmatpush1.msra.mxu0 %v538
      %696 = vmatprep.subr.mxu0 %v543
      %697 = vmatpush1.msra.mxu0 %v542
      %698 = vmatprep.subr.mxu0 %v547
      %699 = vmatpush1.msra.mxu0 %v546
      %700 = vmatprep.subr.mxu0 %v551
      %701 = vmatpush1.msra.mxu0 %v550
      %702 = vmatprep.subr.mxu0 %v555
      %703 = vmatpush1.msra.mxu0 %v554
      %704 = vmatprep.subr.mxu0 %v559
      %705 = vmatpush1.msra.mxu0 %v558
      %706 = vmatprep.mubr.f32.mxu0 %v568
      %707 = vmatmul.mubr.f32.gmra.mrb[0].mxu0 %v567
      %v708 = vpop.f32.mrb[0].mxu0
      %v709 = vadd.f32 0.0, %v708
      %v710 = vpop.f32.mrb[0].mxu0
      %v711 = vadd.f32 0.0, %v710
      %712 = vdwg.mxu0
      %v715 = vcombine.high %v429, %v429
      %v716 = vcombine.high %v430, %v430
      %vm717 = vcmask 31744
      %v719 = vsel %vm717, %v428, 0
      %vm721 = vcmask 1043456
      %v722 = vsel %vm721, %v429, 0
      %v724 = vsel %vm721, %v715, 0
      %v726 = vsel %vm721, %v430, 0
      %v728 = vsel %vm721, %v716, 0
      %730 = vmatprep.subr.mxu0 %v724
      %731 = vmatpush1.msra.mxu0 %v722
      %732 = vmatprep.subr.mxu0 0.0
      %733 = vmatpush1.msra.mxu0 0.0
      %734 = vmatprep.subr.mxu0 0.0
      %735 = vmatpush1.msra.mxu0 0.0
      %736 = vmatprep.subr.mxu0 0.0
      %737 = vmatpush1.msra.mxu0 0.0
      %738 = vmatprep.subr.mxu0 0.0
      %739 = vmatpush1.msra.mxu0 0.0
      %740 = vmatprep.subr.mxu0 0.0
      %741 = vmatpush1.msra.mxu0 0.0
      %742 = vmatprep.subr.mxu0 0.0
      %743 = vmatpush1.msra.mxu0 0.0
      %744 = vmatprep.subr.mxu0 0.0
      %745 = vmatpush1.msra.mxu0 0.0
      %746 = vmatprep.subr.mxu0 0.0
      %747 = vmatpush1.msra.mxu0 0.0
      %748 = vmatprep.subr.mxu0 0.0
      %749 = vmatpush1.msra.mxu0 0.0
      %750 = vmatprep.subr.mxu0 0.0
      %751 = vmatpush1.msra.mxu0 0.0
      %752 = vmatprep.subr.mxu0 0.0
      %753 = vmatpush1.msra.mxu0 0.0
      %754 = vmatprep.subr.mxu0 0.0
      %755 = vmatpush1.msra.mxu0 0.0
      %756 = vmatprep.subr.mxu0 0.0
      %757 = vmatpush1.msra.mxu0 0.0
      %758 = vmatprep.subr.mxu0 0.0
      %759 = vmatpush1.msra.mxu0 0.0
      %760 = vmatprep.subr.mxu0 0.0
      %761 = vmatpush1.msra.mxu0 0.0
      %762 = vmatprep.subr.mxu0 0.0
      %763 = vmatpush1.msra.mxu0 0.0
      %764 = vmatprep.subr.mxu0 0.0
      %765 = vmatpush1.msra.mxu0 0.0
      %766 = vmatprep.subr.mxu0 0.0
      %767 = vmatpush1.msra.mxu0 0.0
      %768 = vmatprep.subr.mxu0 0.0
      %769 = vmatpush1.msra.mxu0 0.0
      %770 = vmatprep.subr.mxu0 0.0
      %771 = vmatpush1.msra.mxu0 0.0
      %772 = vmatprep.subr.mxu0 0.0
      %773 = vmatpush1.msra.mxu0 0.0
      %774 = vmatprep.subr.mxu0 0.0
      %775 = vmatpush1.msra.mxu0 0.0
      %776 = vmatprep.subr.mxu0 0.0
      %777 = vmatpush1.msra.mxu0 0.0
      %778 = vmatprep.subr.mxu0 0.0
      %779 = vmatpush1.msra.mxu0 0.0
      %780 = vmatprep.subr.mxu0 0.0
      %781 = vmatpush1.msra.mxu0 0.0
      %782 = vmatprep.subr.mxu0 0.0
      %783 = vmatpush1.msra.mxu0 0.0
      %784 = vmatprep.subr.mxu0 0.0
      %785 = vmatpush1.msra.mxu0 0.0
      %786 = vmatprep.subr.mxu0 0.0
      %787 = vmatpush1.msra.mxu0 0.0
      %788 = vmatprep.subr.mxu0 0.0
      %789 = vmatpush1.msra.mxu0 0.0
      %790 = vmatprep.subr.mxu0 0.0
      %791 = vmatpush1.msra.mxu0 0.0
      %792 = vmatprep.subr.mxu0 0.0
      %793 = vmatpush1.msra.mxu0 0.0
      %794 = vmatprep.mubr.f32.mxu0 0.0
      %795 = vmatmul.mubr.f32.gmra.mrb[0].mxu0 %v719
      %v796 = vpop.f32.mrb[0].mxu0
      %v797 = vadd.f32 %v638, %v796
      %v798 = vpop.f32.mrb[0].mxu0
      %v799 = vadd.f32 %v640, %v798
      %800 = vdwg.mxu0
      %801 = vmatprep.subr.mxu0 %v728
      %802 = vmatpush1.msra.mxu0 %v726
      %803 = vmatprep.subr.mxu0 0.0
      %804 = vmatpush1.msra.mxu0 0.0
      %805 = vmatprep.subr.mxu0 0.0
      %806 = vmatpush1.msra.mxu0 0.0
      %807 = vmatprep.subr.mxu0 0.0
      %808 = vmatpush1.msra.mxu0 0.0
      %809 = vmatprep.subr.mxu0 0.0
      %810 = vmatpush1.msra.mxu0 0.0
      %811 = vmatprep.subr.mxu0 0.0
      %812 = vmatpush1.msra.mxu0 0.0
      %813 = vmatprep.subr.mxu0 0.0
      %814 = vmatpush1.msra.mxu0 0.0
      %815 = vmatprep.subr.mxu0 0.0
      %816 = vmatpush1.msra.mxu0 0.0
      %817 = vmatprep.subr.mxu0 0.0
      %818 = vmatpush1.msra.mxu0 0.0
      %819 = vmatprep.subr.mxu0 0.0
      %820 = vmatpush1.msra.mxu0 0.0
      %821 = vmatprep.subr.mxu0 0.0
      %822 = vmatpush1.msra.mxu0 0.0
      %823 = vmatprep.subr.mxu0 0.0
      %824 = vmatpush1.msra.mxu0 0.0
      %825 = vmatprep.subr.mxu0 0.0
      %826 = vmatpush1.msra.mxu0 0.0
      %827 = vmatprep.subr.mxu0 0.0
      %828 = vmatpush1.msra.mxu0 0.0
      %829 = vmatprep.subr.mxu0 0.0
      %830 = vmatpush1.msra.mxu0 0.0
      %831 = vmatprep.subr.mxu0 0.0
      %832 = vmatpush1.msra.mxu0 0.0
      %833 = vmatprep.subr.mxu0 0.0
      %834 = vmatpush1.msra.mxu0 0.0
      %835 = vmatprep.subr.mxu0 0.0
      %836 = vmatpush1.msra.mxu0 0.0
      %837 = vmatprep.subr.mxu0 0.0
      %838 = vmatpush1.msra.mxu0 0.0
      %839 = vmatprep.subr.mxu0 0.0
      %840 = vmatpush1.msra.mxu0 0.0
      %841 = vmatprep.subr.mxu0 0.0
      %842 = vmatpush1.msra.mxu0 0.0
      %843 = vmatprep.subr.mxu0 0.0
      %844 = vmatpush1.msra.mxu0 0.0
      %845 = vmatprep.subr.mxu0 0.0
      %846 = vmatpush1.msra.mxu0 0.0
      %847 = vmatprep.subr.mxu0 0.0
      %848 = vmatpush1.msra.mxu0 0.0
      %849 = vmatprep.subr.mxu0 0.0
      %850 = vmatpush1.msra.mxu0 0.0
      %851 = vmatprep.subr.mxu0 0.0
      %852 = vmatpush1.msra.mxu0 0.0
      %853 = vmatprep.subr.mxu0 0.0
      %854 = vmatpush1.msra.mxu0 0.0
      %855 = vmatprep.subr.mxu0 0.0
      %856 = vmatpush1.msra.mxu0 0.0
      %857 = vmatprep.subr.mxu0 0.0
      %858 = vmatpush1.msra.mxu0 0.0
      %859 = vmatprep.subr.mxu0 0.0
      %860 = vmatpush1.msra.mxu0 0.0
      %861 = vmatprep.subr.mxu0 0.0
      %862 = vmatpush1.msra.mxu0 0.0
      %863 = vmatprep.subr.mxu0 0.0
      %864 = vmatpush1.msra.mxu0 0.0
      %865 = vmatprep.mubr.f32.mxu0 0.0
      %866 = vmatmul.mubr.f32.gmra.mrb[0].mxu0 %v719
      %v867 = vpop.f32.mrb[0].mxu0
      %v868 = vadd.f32 %v709, %v867
      %v869 = vpop.f32.mrb[0].mxu0
      %v870 = vadd.f32 %v711, %v869
      %871 = vdwg.mxu0
      %v872 = vld [vmem:[%s401] sm:$0xff]
      %v873 = vld [vmem:[%s2] sm:$0xff]
      %v874 = vld [vmem:[%s2 + $0x8] sm:$0xff]
      %v875 = vld [vmem:[%s2 + $0x10] sm:$0xff]
      %v876 = vld [vmem:[%s2 + $0x18] sm:$0xff]
      %v877 = vld [vmem:[%s2 + $0x20] sm:$0xff]
      %v878 = vld [vmem:[%s2 + $0x28] sm:$0xff]
      %v879 = vld [vmem:[%s2 + $0x30] sm:$0xff]
      %v880 = vld [vmem:[%s2 + $0x38] sm:$0xff]
      %v881 = vld [vmem:[%s2 + $0x40] sm:$0xff]
      %v882 = vld [vmem:[%s2 + $0x48] sm:$0xff]
      %v883 = vld [vmem:[%s2 + $0x50] sm:$0xff]
      %v884 = vld [vmem:[%s2 + $0x58] sm:$0xff]
      %v885 = vld [vmem:[%s2 + $0x60] sm:$0xff]
      %v886 = vld [vmem:[%s2 + $0x68] sm:$0xff]
      %v887 = vld [vmem:[%s2 + $0x70] sm:$0xff]
      %v888 = vld [vmem:[%s2 + $0x78] sm:$0xff]
      %v889 = vld [vmem:[%s2 + $0x80] sm:$0xff]
      %v890 = vld [vmem:[%s2 + $0x88] sm:$0xff]
      %v891 = vld [vmem:[%s2 + $0x90] sm:$0xff]
      %v892 = vld [vmem:[%s2 + $0x98] sm:$0xff]
      %v893 = vld [vmem:[%s2 + $0xa0] sm:$0xff]
      %v894 = vld [vmem:[%s2 + $0xa8] sm:$0xff]
      %v895 = vld [vmem:[%s2 + $0xb0] sm:$0xff]
      %v896 = vld [vmem:[%s2 + $0xb8] sm:$0xff]
      %v897 = vld [vmem:[%s2 + $0xc0] sm:$0xff]
      %v898 = vld [vmem:[%s2 + $0xc8] sm:$0xff]
      %v899 = vld [vmem:[%s2 + $0xd0] sm:$0xff]
      %v900 = vld [vmem:[%s2 + $0xd8] sm:$0xff]
      %v901 = vld [vmem:[%s2 + $0xe0] sm:$0xff]
      %v902 = vld [vmem:[%s2 + $0xe8] sm:$0xff]
      %v903 = vld [vmem:[%s2 + $0xf0] sm:$0xff]
      %v904 = vld [vmem:[%s2 + $0xf8] sm:$0xff]
      %v905 = vld [vmem:[%s2 + $0x100] sm:$0xff]
      %v906 = vld [vmem:[%s2 + $0x108] sm:$0xff]
      %v907 = vld [vmem:[%s2 + $0x110] sm:$0xff]
      %v908 = vld [vmem:[%s2 + $0x118] sm:$0xff]
      %v909 = vld [vmem:[%s2 + $0x120] sm:$0xff]
      %v910 = vld [vmem:[%s2 + $0x128] sm:$0xff]
      %v911 = vld [vmem:[%s2 + $0x130] sm:$0xff]
      %v912 = vld [vmem:[%s2 + $0x138] sm:$0xff]
      %v913 = vld [vmem:[%s2 + $0x140] sm:$0xff]
      %v914 = vld [vmem:[%s2 + $0x148] sm:$0xff]
      %v915 = vld [vmem:[%s2 + $0x150] sm:$0xff]
      %v916 = vld [vmem:[%s2 + $0x158] sm:$0xff]
      %v917 = vld [vmem:[%s2 + $0x160] sm:$0xff]
      %v918 = vld [vmem:[%s2 + $0x168] sm:$0xff]
      %v919 = vld [vmem:[%s2 + $0x170] sm:$0xff]
      %v920 = vld [vmem:[%s2 + $0x178] sm:$0xff]
      %v921 = vld [vmem:[%s2 + $0x180] sm:$0xff]
      %v922 = vld [vmem:[%s2 + $0x188] sm:$0xff]
      %v923 = vld [vmem:[%s2 + $0x190] sm:$0xff]
      %v924 = vld [vmem:[%s2 + $0x198] sm:$0xff]
      %v925 = vld [vmem:[%s2 + $0x1a0] sm:$0xff]
      %v926 = vld [vmem:[%s2 + $0x1a8] sm:$0xff]
      %v927 = vld [vmem:[%s2 + $0x1b0] sm:$0xff]
      %v928 = vld [vmem:[%s2 + $0x1b8] sm:$0xff]
      %v929 = vld [vmem:[%s2 + $0x1c0] sm:$0xff]
      %v930 = vld [vmem:[%s2 + $0x1c8] sm:$0xff]
      %v931 = vld [vmem:[%s2 + $0x1d0] sm:$0xff]
      %v932 = vld [vmem:[%s2 + $0x1d8] sm:$0xff]
      %v933 = vld [vmem:[%s2 + $0x1e0] sm:$0xff]
      %v934 = vld [vmem:[%s2 + $0x1e8] sm:$0xff]
      %v935 = vld [vmem:[%s2 + $0x1f0] sm:$0xff]
      %v936 = vld [vmem:[%s2 + $0x1f8] sm:$0xff]
      %v937 = vld [vmem:[%s2 + $0x200] sm:$0xff]
      %v938 = vld [vmem:[%s2 + $0x208] sm:$0xff]
      %v939 = vld [vmem:[%s2 + $0x210] sm:$0xff]
      %v940 = vld [vmem:[%s2 + $0x218] sm:$0xff]
      %v941 = vld [vmem:[%s2 + $0x220] sm:$0xff]
      %v942 = vld [vmem:[%s2 + $0x228] sm:$0xff]
      %v943 = vld [vmem:[%s2 + $0x230] sm:$0xff]
      %v944 = vld [vmem:[%s2 + $0x238] sm:$0xff]
      %v945 = vld [vmem:[%s2 + $0x240] sm:$0xff]
      %v946 = vld [vmem:[%s2 + $0x248] sm:$0xff]
      %v947 = vld [vmem:[%s2 + $0x250] sm:$0xff]
      %v948 = vld [vmem:[%s2 + $0x258] sm:$0xff]
      %v949 = vld [vmem:[%s2 + $0x260] sm:$0xff]
      %v950 = vld [vmem:[%s2 + $0x268] sm:$0xff]
      %v951 = vld [vmem:[%s2 + $0x270] sm:$0xff]
      %v952 = vld [vmem:[%s2 + $0x278] sm:$0xff]
      %v953 = vld [vmem:[%s2 + $0x280] sm:$0xff]
      %v954 = vld [vmem:[%s2 + $0x288] sm:$0xff]
      %v955 = vld [vmem:[%s2 + $0x290] sm:$0xff]
      %v956 = vld [vmem:[%s2 + $0x298] sm:$0xff]
      %v957 = vld [vmem:[%s2 + $0x2a0] sm:$0xff]
      %v958 = vld [vmem:[%s2 + $0x2a8] sm:$0xff]
      %v959 = vld [vmem:[%s2 + $0x2b0] sm:$0xff]
      %v960 = vld [vmem:[%s2 + $0x2b8] sm:$0xff]
      %v961 = vld [vmem:[%s2 + $0x2c0] sm:$0xff]
      %v962 = vld [vmem:[%s2 + $0x2c8] sm:$0xff]
      %v963 = vld [vmem:[%s2 + $0x2d0] sm:$0xff]
      %v964 = vld [vmem:[%s2 + $0x2d8] sm:$0xff]
      %v965 = vld [vmem:[%s2 + $0x2e0] sm:$0xff]
      %v966 = vld [vmem:[%s2 + $0x2e8] sm:$0xff]
      %v967 = vld [vmem:[%s2 + $0x2f0] sm:$0xff]
      %v968 = vld [vmem:[%s2 + $0x2f8] sm:$0xff]
      %v969 = vld [vmem:[%s2 + $0x300] sm:$0xff]
      %v970 = vld [vmem:[%s2 + $0x308] sm:$0xff]
      %v971 = vld [vmem:[%s2 + $0x310] sm:$0xff]
      %v972 = vld [vmem:[%s2 + $0x318] sm:$0xff]
      %v973 = vld [vmem:[%s2 + $0x320] sm:$0xff]
      %v974 = vld [vmem:[%s2 + $0x328] sm:$0xff]
      %v975 = vld [vmem:[%s2 + $0x330] sm:$0xff]
      %v976 = vld [vmem:[%s2 + $0x338] sm:$0xff]
      %v977 = vld [vmem:[%s2 + $0x340] sm:$0xff]
      %v978 = vld [vmem:[%s2 + $0x348] sm:$0xff]
      %v979 = vld [vmem:[%s2 + $0x350] sm:$0xff]
      %v980 = vld [vmem:[%s2 + $0x358] sm:$0xff]
      %v981 = vld [vmem:[%s2 + $0x360] sm:$0xff]
      %v982 = vld [vmem:[%s2 + $0x368] sm:$0xff]
      %v983 = vld [vmem:[%s2 + $0x370] sm:$0xff]
      %v984 = vld [vmem:[%s2 + $0x378] sm:$0xff]
      %v985 = vld [vmem:[%s2 + $0x380] sm:$0xff]
      %v986 = vld [vmem:[%s2 + $0x388] sm:$0xff]
      %v987 = vld [vmem:[%s2 + $0x390] sm:$0xff]
      %v988 = vld [vmem:[%s2 + $0x398] sm:$0xff]
      %v989 = vld [vmem:[%s2 + $0x3a0] sm:$0xff]
      %v990 = vld [vmem:[%s2 + $0x3a8] sm:$0xff]
      %v991 = vld [vmem:[%s2 + $0x3b0] sm:$0xff]
      %v992 = vld [vmem:[%s2 + $0x3b8] sm:$0xff]
      %v993 = vld [vmem:[%s2 + $0x3c0] sm:$0xff]
      %v994 = vld [vmem:[%s2 + $0x3c8] sm:$0xff]
      %v995 = vld [vmem:[%s2 + $0x3d0] sm:$0xff]
      %v996 = vld [vmem:[%s2 + $0x3d8] sm:$0xff]
      %v997 = vld [vmem:[%s2 + $0x3e0] sm:$0xff]
      %v998 = vld [vmem:[%s2 + $0x3e8] sm:$0xff]
      %v999 = vld [vmem:[%s2 + $0x3f0] sm:$0xff]
      %v1000 = vld [vmem:[%s2 + $0x3f8] sm:$0xff]
      %v1001 = vld [vmem:[%s2 + $0x400] sm:$0xff]
      %v1002 = vld [vmem:[%s2 + $0x408] sm:$0xff]
      %v1003 = vld [vmem:[%s2 + $0x410] sm:$0xff]
      %v1004 = vld [vmem:[%s2 + $0x418] sm:$0xff]
      %v1005 = vld [vmem:[%s2 + $0x420] sm:$0xff]
      %v1006 = vld [vmem:[%s2 + $0x428] sm:$0xff]
      %v1007 = vld [vmem:[%s2 + $0x430] sm:$0xff]
      %v1008 = vld [vmem:[%s2 + $0x438] sm:$0xff]
      %v1009 = vld [vmem:[%s2 + $0x440] sm:$0xff]
      %v1010 = vld [vmem:[%s2 + $0x448] sm:$0xff]
      %v1011 = vld [vmem:[%s2 + $0x450] sm:$0xff]
      %v1012 = vld [vmem:[%s2 + $0x458] sm:$0xff]
      %v1013 = vld [vmem:[%s2 + $0x460] sm:$0xff]
      %v1014 = vld [vmem:[%s2 + $0x468] sm:$0xff]
      %v1015 = vld [vmem:[%s2 + $0x470] sm:$0xff]
      %v1016 = vld [vmem:[%s2 + $0x478] sm:$0xff]
      %v1017 = vld [vmem:[%s2 + $0x480] sm:$0xff]
      %v1018 = vld [vmem:[%s2 + $0x488] sm:$0xff]
      %v1019 = vld [vmem:[%s2 + $0x490] sm:$0xff]
      %v1020 = vld [vmem:[%s2 + $0x498] sm:$0xff]
      %v1021 = vld [vmem:[%s2 + $0x4a0] sm:$0xff]
      %v1022 = vld [vmem:[%s2 + $0x4a8] sm:$0xff]
      %v1023 = vld [vmem:[%s2 + $0x4b0] sm:$0xff]
      %v1024 = vld [vmem:[%s2 + $0x4b8] sm:$0xff]
      %v1025 = vld [vmem:[%s2 + $0x4c0] sm:$0xff]
      %v1026 = vld [vmem:[%s2 + $0x4c8] sm:$0xff]
      %v1027 = vld [vmem:[%s2 + $0x4d0] sm:$0xff]
      %v1028 = vld [vmem:[%s2 + $0x4d8] sm:$0xff]
      %v1029 = vld [vmem:[%s2 + $0x4e0] sm:$0xff]
      %v1030 = vld [vmem:[%s2 + $0x4e8] sm:$0xff]
      %v1031 = vld [vmem:[%s2 + $0x4f0] sm:$0xff]
      %v1032 = vld [vmem:[%s2 + $0x4f8] sm:$0xff]
      %v1033 = vld [vmem:[%s2 + $0x500] sm:$0xff]
      %v1034 = vld [vmem:[%s2 + $0x508] sm:$0xff]
      %v1035 = vld [vmem:[%s2 + $0x510] sm:$0xff]
      %v1036 = vld [vmem:[%s2 + $0x518] sm:$0xff]
      %v1037 = vld [vmem:[%s2 + $0x520] sm:$0xff]
      %v1038 = vld [vmem:[%s2 + $0x528] sm:$0xff]
      %v1039 = vld [vmem:[%s2 + $0x530] sm:$0xff]
      %v1040 = vld [vmem:[%s2 + $0x538] sm:$0xff]
      %v1041 = vld [vmem:[%s2 + $0x540] sm:$0xff]
      %v1042 = vld [vmem:[%s2 + $0x548] sm:$0xff]
      %v1043 = vld [vmem:[%s2 + $0x550] sm:$0xff]
      %v1044 = vld [vmem:[%s2 + $0x558] sm:$0xff]
      %v1045 = vld [vmem:[%s2 + $0x560] sm:$0xff]
      %v1046 = vld [vmem:[%s2 + $0x568] sm:$0xff]
      %v1047 = vld [vmem:[%s2 + $0x570] sm:$0xff]
      %v1048 = vld [vmem:[%s2 + $0x578] sm:$0xff]
      %v1049 = vld [vmem:[%s2 + $0x580] sm:$0xff]
      %v1050 = vld [vmem:[%s2 + $0x588] sm:$0xff]
      %v1051 = vld [vmem:[%s2 + $0x590] sm:$0xff]
      %v1052 = vld [vmem:[%s2 + $0x598] sm:$0xff]
      %v1053 = vld [vmem:[%s2 + $0x5a0] sm:$0xff]
      %v1054 = vld [vmem:[%s2 + $0x5a8] sm:$0xff]
      %v1055 = vld [vmem:[%s2 + $0x5b0] sm:$0xff]
      %v1056 = vld [vmem:[%s2 + $0x5b8] sm:$0xff]
      %v1057 = vld [vmem:[%s2 + $0x5c0] sm:$0xff]
      %v1058 = vld [vmem:[%s2 + $0x5c8] sm:$0xff]
      %v1059 = vld [vmem:[%s2 + $0x5d0] sm:$0xff]
      %v1060 = vld [vmem:[%s2 + $0x5d8] sm:$0xff]
      %v1061 = vld [vmem:[%s2 + $0x5e0] sm:$0xff]
      %v1062 = vld [vmem:[%s2 + $0x5e8] sm:$0xff]
      %v1063 = vld [vmem:[%s2 + $0x5f0] sm:$0xff]
      %v1064 = vld [vmem:[%s2 + $0x5f8] sm:$0xff]
      %v1065 = vld [vmem:[%s2 + $0x600] sm:$0xff]
      %v1066 = vld [vmem:[%s2 + $0x608] sm:$0xff]
      %v1067 = vld [vmem:[%s2 + $0x610] sm:$0xff]
      %v1068 = vld [vmem:[%s2 + $0x618] sm:$0xff]
      %v1069 = vld [vmem:[%s2 + $0x620] sm:$0xff]
      %v1070 = vld [vmem:[%s2 + $0x628] sm:$0xff]
      %v1071 = vld [vmem:[%s2 + $0x630] sm:$0xff]
      %v1072 = vld [vmem:[%s2 + $0x638] sm:$0xff]
      %v1073 = vld [vmem:[%s2 + $0x640] sm:$0xff]
      %v1074 = vld [vmem:[%s2 + $0x648] sm:$0xff]
      %v1075 = vld [vmem:[%s2 + $0x650] sm:$0xff]
      %v1076 = vld [vmem:[%s2 + $0x658] sm:$0xff]
      %v1077 = vld [vmem:[%s2 + $0x660] sm:$0xff]
      %v1078 = vld [vmem:[%s2 + $0x668] sm:$0xff]
      %v1079 = vld [vmem:[%s2 + $0x670] sm:$0xff]
      %v1080 = vld [vmem:[%s2 + $0x678] sm:$0xff]
      %v1081 = vld [vmem:[%s2 + $0x680] sm:$0xff]
      %v1082 = vld [vmem:[%s2 + $0x688] sm:$0xff]
      %v1083 = vld [vmem:[%s2 + $0x690] sm:$0xff]
      %v1084 = vld [vmem:[%s2 + $0x698] sm:$0xff]
      %v1085 = vld [vmem:[%s2 + $0x6a0] sm:$0xff]
      %v1086 = vld [vmem:[%s2 + $0x6a8] sm:$0xff]
      %v1087 = vld [vmem:[%s2 + $0x6b0] sm:$0xff]
      %v1088 = vld [vmem:[%s2 + $0x6b8] sm:$0xff]
      %v1089 = vld [vmem:[%s2 + $0x6c0] sm:$0xff]
      %v1090 = vld [vmem:[%s2 + $0x6c8] sm:$0xff]
      %v1091 = vld [vmem:[%s2 + $0x6d0] sm:$0xff]
      %v1092 = vld [vmem:[%s2 + $0x6d8] sm:$0xff]
      %v1093 = vld [vmem:[%s2 + $0x6e0] sm:$0xff]
      %v1094 = vld [vmem:[%s2 + $0x6e8] sm:$0xff]
      %v1095 = vld [vmem:[%s2 + $0x6f0] sm:$0xff]
      %v1096 = vld [vmem:[%s2 + $0x6f8] sm:$0xff]
      %v1097 = vld [vmem:[%s2 + $0x700] sm:$0xff]
      %v1098 = vld [vmem:[%s2 + $0x708] sm:$0xff]
      %v1099 = vld [vmem:[%s2 + $0x710] sm:$0xff]
      %v1100 = vld [vmem:[%s2 + $0x718] sm:$0xff]
      %v1101 = vld [vmem:[%s2 + $0x720] sm:$0xff]
      %v1102 = vld [vmem:[%s2 + $0x728] sm:$0xff]
      %v1103 = vld [vmem:[%s2 + $0x730] sm:$0xff]
      %v1104 = vld [vmem:[%s2 + $0x738] sm:$0xff]
      %v1105 = vld [vmem:[%s2 + $0x740] sm:$0xff]
      %v1106 = vld [vmem:[%s2 + $0x748] sm:$0xff]
      %v1107 = vld [vmem:[%s2 + $0x750] sm:$0xff]
      %v1108 = vld [vmem:[%s2 + $0x758] sm:$0xff]
      %v1109 = vld [vmem:[%s2 + $0x760] sm:$0xff]
      %v1110 = vld [vmem:[%s2 + $0x768] sm:$0xff]
      %v1111 = vld [vmem:[%s2 + $0x770] sm:$0xff]
      %v1112 = vld [vmem:[%s2 + $0x778] sm:$0xff]
      %v1113 = vld [vmem:[%s2 + $0x780] sm:$0xff]
      %v1114 = vld [vmem:[%s2 + $0x788] sm:$0xff]
      %v1115 = vld [vmem:[%s2 + $0x790] sm:$0xff]
      %v1116 = vld [vmem:[%s2 + $0x798] sm:$0xff]
      %v1117 = vld [vmem:[%s2 + $0x7a0] sm:$0xff]
      %v1118 = vld [vmem:[%s2 + $0x7a8] sm:$0xff]
      %v1119 = vld [vmem:[%s2 + $0x7b0] sm:$0xff]
      %v1120 = vld [vmem:[%s2 + $0x7b8] sm:$0xff]
      %v1121 = vld [vmem:[%s2 + $0x7c0] sm:$0xff]
      %v1122 = vld [vmem:[%s2 + $0x7c8] sm:$0xff]
      %v1123 = vld [vmem:[%s2 + $0x7d0] sm:$0xff]
      %v1124 = vld [vmem:[%s2 + $0x7d8] sm:$0xff]
      %v1125 = vld [vmem:[%s2 + $0x7e0] sm:$0xff]
      %v1126 = vld [vmem:[%s2 + $0x7e8] sm:$0xff]
      %v1127 = vld [vmem:[%s2 + $0x7f0] sm:$0xff]
      %v1128 = vld [vmem:[%s2 + $0x7f8] sm:$0xff]
      %v1130 = vcombine.high %v872, %v872
      %v1132 = vunpack.c.l.s4 1983009808
      %v1133 = vunpack.c.0.s8 %v1132
      %v1134 = vlaneseq
      %v1135 = vshrl.u32 %v1134, 7
      %v1136 = vsub.s32 %v1133, %v1135
      %v1137 = vrot.slane %v872, %v1136
      %v1139 = vunpack.c.l.s4 1983009808
      %v1140 = vunpack.c.0.s8 %v1139
      %v1141 = vlaneseq
      %v1142 = vshrl.u32 %v1141, 7
      %v1143 = vsub.s32 %v1140, %v1142
      %v1144 = vrot.slane %v1130, %v1143
      %v1145 = vcombine.high %v1137, %v1137
      %v1146 = vcombine.high %v1144, %v1144
      %1151 = vmatprep.subr.mxu0 %v874
      %1152 = vmatpush1.msra.mxu0 %v873
      %1153 = vmatprep.subr.mxu0 %v878
      %1154 = vmatpush1.msra.mxu0 %v877
      %1155 = vmatprep.subr.mxu0 %v882
      %1156 = vmatpush1.msra.mxu0 %v881
      %1157 = vmatprep.subr.mxu0 %v886
      %1158 = vmatpush1.msra.mxu0 %v885
      %1159 = vmatprep.subr.mxu0 %v890
      %1160 = vmatpush1.msra.mxu0 %v889
      %1161 = vmatprep.subr.mxu0 %v894
      %1162 = vmatpush1.msra.mxu0 %v893
      %1163 = vmatprep.subr.mxu0 %v898
      %1164 = vmatpush1.msra.mxu0 %v897
      %1165 = vmatprep.subr.mxu0 %v902
      %1166 = vmatpush1.msra.mxu0 %v901
      %1167 = vmatprep.subr.mxu0 %v906
      %1168 = vmatpush1.msra.mxu0 %v905
      %1169 = vmatprep.subr.mxu0 %v910
      %1170 = vmatpush1.msra.mxu0 %v909
      %1171 = vmatprep.subr.mxu0 %v914
      %1172 = vmatpush1.msra.mxu0 %v913
      %1173 = vmatprep.subr.mxu0 %v918
      %1174 = vmatpush1.msra.mxu0 %v917
      %1175 = vmatprep.subr.mxu0 %v922
      %1176 = vmatpush1.msra.mxu0 %v921
      %1177 = vmatprep.subr.mxu0 %v926
      %1178 = vmatpush1.msra.mxu0 %v925
      %1179 = vmatprep.subr.mxu0 %v930
      %1180 = vmatpush1.msra.mxu0 %v929
      %1181 = vmatprep.subr.mxu0 %v934
      %1182 = vmatpush1.msra.mxu0 %v933
      %1183 = vmatprep.subr.mxu0 %v938
      %1184 = vmatpush1.msra.mxu0 %v937
      %1185 = vmatprep.subr.mxu0 %v942
      %1186 = vmatpush1.msra.mxu0 %v941
      %1187 = vmatprep.subr.mxu0 %v946
      %1188 = vmatpush1.msra.mxu0 %v945
      %1189 = vmatprep.subr.mxu0 %v950
      %1190 = vmatpush1.msra.mxu0 %v949
      %1191 = vmatprep.subr.mxu0 %v954
      %1192 = vmatpush1.msra.mxu0 %v953
      %1193 = vmatprep.subr.mxu0 %v958
      %1194 = vmatpush1.msra.mxu0 %v957
      %1195 = vmatprep.subr.mxu0 %v962
      %1196 = vmatpush1.msra.mxu0 %v961
      %1197 = vmatprep.subr.mxu0 %v966
      %1198 = vmatpush1.msra.mxu0 %v965
      %1199 = vmatprep.subr.mxu0 %v970
      %1200 = vmatpush1.msra.mxu0 %v969
      %1201 = vmatprep.subr.mxu0 %v974
      %1202 = vmatpush1.msra.mxu0 %v973
      %1203 = vmatprep.subr.mxu0 %v978
      %1204 = vmatpush1.msra.mxu0 %v977
      %1205 = vmatprep.subr.mxu0 %v982
      %1206 = vmatpush1.msra.mxu0 %v981
      %1207 = vmatprep.subr.mxu0 %v986
      %1208 = vmatpush1.msra.mxu0 %v985
      %1209 = vmatprep.subr.mxu0 %v990
      %1210 = vmatpush1.msra.mxu0 %v989
      %1211 = vmatprep.subr.mxu0 %v994
      %1212 = vmatpush1.msra.mxu0 %v993
      %1213 = vmatprep.subr.mxu0 %v998
      %1214 = vmatpush1.msra.mxu0 %v997
      %1215 = vmatprep.mubr.f32.mxu0 %v1145
      %1216 = vmatmul.mubr.f32.gmra.mrb[0].mxu0 %v1137
      %v1217 = vpop.f32.mrb[0].mxu0
      %v1218 = vadd.f32 0.0, %v1217
      %v1219 = vpop.f32.mrb[0].mxu0
      %v1220 = vadd.f32 0.0, %v1219
      %1221 = vdwg.mxu0
      %1222 = vmatprep.subr.mxu0 %v1002
      %1223 = vmatpush1.msra.mxu0 %v1001
      %1224 = vmatprep.subr.mxu0 %v1006
      %1225 = vmatpush1.msra.mxu0 %v1005
      %1226 = vmatprep.subr.mxu0 %v1010
      %1227 = vmatpush1.msra.mxu0 %v1009
      %1228 = vmatprep.subr.mxu0 %v1014
      %1229 = vmatpush1.msra.mxu0 %v1013
      %1230 = vmatprep.subr.mxu0 %v1018
      %1231 = vmatpush1.msra.mxu0 %v1017
      %1232 = vmatprep.subr.mxu0 %v1022
      %1233 = vmatpush1.msra.mxu0 %v1021
      %1234 = vmatprep.subr.mxu0 %v1026
      %1235 = vmatpush1.msra.mxu0 %v1025
      %1236 = vmatprep.subr.mxu0 %v1030
      %1237 = vmatpush1.msra.mxu0 %v1029
      %1238 = vmatprep.subr.mxu0 %v1034
      %1239 = vmatpush1.msra.mxu0 %v1033
      %1240 = vmatprep.subr.mxu0 %v1038
      %1241 = vmatpush1.msra.mxu0 %v1037
      %1242 = vmatprep.subr.mxu0 %v1042
      %1243 = vmatpush1.msra.mxu0 %v1041
      %1244 = vmatprep.subr.mxu0 %v1046
      %1245 = vmatpush1.msra.mxu0 %v1045
      %1246 = vmatprep.subr.mxu0 %v1050
      %1247 = vmatpush1.msra.mxu0 %v1049
      %1248 = vmatprep.subr.mxu0 %v1054
      %1249 = vmatpush1.msra.mxu0 %v1053
      %1250 = vmatprep.subr.mxu0 %v1058
      %1251 = vmatpush1.msra.mxu0 %v1057
      %1252 = vmatprep.subr.mxu0 %v1062
      %1253 = vmatpush1.msra.mxu0 %v1061
      %1254 = vmatprep.subr.mxu0 %v1066
      %1255 = vmatpush1.msra.mxu0 %v1065
      %1256 = vmatprep.subr.mxu0 %v1070
      %1257 = vmatpush1.msra.mxu0 %v1069
      %1258 = vmatprep.subr.mxu0 %v1074
      %1259 = vmatpush1.msra.mxu0 %v1073
      %1260 = vmatprep.subr.mxu0 %v1078
      %1261 = vmatpush1.msra.mxu0 %v1077
      %1262 = vmatprep.subr.mxu0 %v1082
      %1263 = vmatpush1.msra.mxu0 %v1081
      %1264 = vmatprep.subr.mxu0 %v1086
      %1265 = vmatpush1.msra.mxu0 %v1085
      %1266 = vmatprep.subr.mxu0 %v1090
      %1267 = vmatpush1.msra.mxu0 %v1089
      %1268 = vmatprep.subr.mxu0 %v1094
      %1269 = vmatpush1.msra.mxu0 %v1093
      %1270 = vmatprep.subr.mxu0 %v1098
      %1271 = vmatpush1.msra.mxu0 %v1097
      %1272 = vmatprep.subr.mxu0 %v1102
      %1273 = vmatpush1.msra.mxu0 %v1101
      %1274 = vmatprep.subr.mxu0 %v1106
      %1275 = vmatpush1.msra.mxu0 %v1105
      %1276 = vmatprep.subr.mxu0 %v1110
      %1277 = vmatpush1.msra.mxu0 %v1109
      %1278 = vmatprep.subr.mxu0 %v1114
      %1279 = vmatpush1.msra.mxu0 %v1113
      %1280 = vmatprep.subr.mxu0 %v1118
      %1281 = vmatpush1.msra.mxu0 %v1117
      %1282 = vmatprep.subr.mxu0 %v1122
      %1283 = vmatpush1.msra.mxu0 %v1121
      %1284 = vmatprep.subr.mxu0 %v1126
      %1285 = vmatpush1.msra.mxu0 %v1125
      %1286 = vmatprep.mubr.f32.mxu0 %v1146
      %1287 = vmatmul.mubr.f32.gmra.mrb[0].mxu0 %v1144
      %v1288 = vpop.f32.mrb[0].mxu0
      %v1289 = vadd.f32 %v1218, %v1288
      %v1290 = vpop.f32.mrb[0].mxu0
      %v1291 = vadd.f32 %v1220, %v1290
      %1292 = vdwg.mxu0
      %1293 = vmatprep.subr.mxu0 %v876
      %1294 = vmatpush1.msra.mxu0 %v875
      %1295 = vmatprep.subr.mxu0 %v880
      %1296 = vmatpush1.msra.mxu0 %v879
      %1297 = vmatprep.subr.mxu0 %v884
      %1298 = vmatpush1.msra.mxu0 %v883
      %1299 = vmatprep.subr.mxu0 %v888
      %1300 = vmatpush1.msra.mxu0 %v887
      %1301 = vmatprep.subr.mxu0 %v892
      %1302 = vmatpush1.msra.mxu0 %v891
      %1303 = vmatprep.subr.mxu0 %v896
      %1304 = vmatpush1.msra.mxu0 %v895
      %1305 = vmatprep.subr.mxu0 %v900
      %1306 = vmatpush1.msra.mxu0 %v899
      %1307 = vmatprep.subr.mxu0 %v904
      %1308 = vmatpush1.msra.mxu0 %v903
      %1309 = vmatprep.subr.mxu0 %v908
      %1310 = vmatpush1.msra.mxu0 %v907
      %1311 = vmatprep.subr.mxu0 %v912
      %1312 = vmatpush1.msra.mxu0 %v911
      %1313 = vmatprep.subr.mxu0 %v916
      %1314 = vmatpush1.msra.mxu0 %v915
      %1315 = vmatprep.subr.mxu0 %v920
      %1316 = vmatpush1.msra.mxu0 %v919
      %1317 = vmatprep.subr.mxu0 %v924
      %1318 = vmatpush1.msra.mxu0 %v923
      %1319 = vmatprep.subr.mxu0 %v928
      %1320 = vmatpush1.msra.mxu0 %v927
      %1321 = vmatprep.subr.mxu0 %v932
      %1322 = vmatpush1.msra.mxu0 %v931
      %1323 = vmatprep.subr.mxu0 %v936
      %1324 = vmatpush1.msra.mxu0 %v935
      %1325 = vmatprep.subr.mxu0 %v940
      %1326 = vmatpush1.msra.mxu0 %v939
      %1327 = vmatprep.subr.mxu0 %v944
      %1328 = vmatpush1.msra.mxu0 %v943
      %1329 = vmatprep.subr.mxu0 %v948
      %1330 = vmatpush1.msra.mxu0 %v947
      %1331 = vmatprep.subr.mxu0 %v952
      %1332 = vmatpush1.msra.mxu0 %v951
      %1333 = vmatprep.subr.mxu0 %v956
      %1334 = vmatpush1.msra.mxu0 %v955
      %1335 = vmatprep.subr.mxu0 %v960
      %1336 = vmatpush1.msra.mxu0 %v959
      %1337 = vmatprep.subr.mxu0 %v964
      %1338 = vmatpush1.msra.mxu0 %v963
      %1339 = vmatprep.subr.mxu0 %v968
      %1340 = vmatpush1.msra.mxu0 %v967
      %1341 = vmatprep.subr.mxu0 %v972
      %1342 = vmatpush1.msra.mxu0 %v971
      %1343 = vmatprep.subr.mxu0 %v976
      %1344 = vmatpush1.msra.mxu0 %v975
      %1345 = vmatprep.subr.mxu0 %v980
      %1346 = vmatpush1.msra.mxu0 %v979
      %1347 = vmatprep.subr.mxu0 %v984
      %1348 = vmatpush1.msra.mxu0 %v983
      %1349 = vmatprep.subr.mxu0 %v988
      %1350 = vmatpush1.msra.mxu0 %v987
      %1351 = vmatprep.subr.mxu0 %v992
      %1352 = vmatpush1.msra.mxu0 %v991
      %1353 = vmatprep.subr.mxu0 %v996
      %1354 = vmatpush1.msra.mxu0 %v995
      %1355 = vmatprep.subr.mxu0 %v1000
      %1356 = vmatpush1.msra.mxu0 %v999
      %1357 = vmatprep.mubr.f32.mxu0 %v1145
      %1358 = vmatmul.mubr.f32.gmra.mrb[0].mxu0 %v1137
      %v1359 = vpop.f32.mrb[0].mxu0
      %v1360 = vadd.f32 0.0, %v1359
      %v1361 = vpop.f32.mrb[0].mxu0
      %v1362 = vadd.f32 0.0, %v1361
      %1363 = vdwg.mxu0
      %1364 = vmatprep.subr.mxu0 %v1004
      %1365 = vmatpush1.msra.mxu0 %v1003
      %1366 = vmatprep.subr.mxu0 %v1008
      %1367 = vmatpush1.msra.mxu0 %v1007
      %1368 = vmatprep.subr.mxu0 %v1012
      %1369 = vmatpush1.msra.mxu0 %v1011
      %1370 = vmatprep.subr.mxu0 %v1016
      %1371 = vmatpush1.msra.mxu0 %v1015
      %1372 = vmatprep.subr.mxu0 %v1020
      %1373 = vmatpush1.msra.mxu0 %v1019
      %1374 = vmatprep.subr.mxu0 %v1024
      %1375 = vmatpush1.msra.mxu0 %v1023
      %1376 = vmatprep.subr.mxu0 %v1028
      %1377 = vmatpush1.msra.mxu0 %v1027
      %1378 = vmatprep.subr.mxu0 %v1032
      %1379 = vmatpush1.msra.mxu0 %v1031
      %1380 = vmatprep.subr.mxu0 %v1036
      %1381 = vmatpush1.msra.mxu0 %v1035
      %1382 = vmatprep.subr.mxu0 %v1040
      %1383 = vmatpush1.msra.mxu0 %v1039
      %1384 = vmatprep.subr.mxu0 %v1044
      %1385 = vmatpush1.msra.mxu0 %v1043
      %1386 = vmatprep.subr.mxu0 %v1048
      %1387 = vmatpush1.msra.mxu0 %v1047
      %1388 = vmatprep.subr.mxu0 %v1052
      %1389 = vmatpush1.msra.mxu0 %v1051
      %1390 = vmatprep.subr.mxu0 %v1056
      %1391 = vmatpush1.msra.mxu0 %v1055
      %1392 = vmatprep.subr.mxu0 %v1060
      %1393 = vmatpush1.msra.mxu0 %v1059
      %1394 = vmatprep.subr.mxu0 %v1064
      %1395 = vmatpush1.msra.mxu0 %v1063
      %1396 = vmatprep.subr.mxu0 %v1068
      %1397 = vmatpush1.msra.mxu0 %v1067
      %1398 = vmatprep.subr.mxu0 %v1072
      %1399 = vmatpush1.msra.mxu0 %v1071
      %1400 = vmatprep.subr.mxu0 %v1076
      %1401 = vmatpush1.msra.mxu0 %v1075
      %1402 = vmatprep.subr.mxu0 %v1080
      %1403 = vmatpush1.msra.mxu0 %v1079
      %1404 = vmatprep.subr.mxu0 %v1084
      %1405 = vmatpush1.msra.mxu0 %v1083
      %1406 = vmatprep.subr.mxu0 %v1088
      %1407 = vmatpush1.msra.mxu0 %v1087
      %1408 = vmatprep.subr.mxu0 %v1092
      %1409 = vmatpush1.msra.mxu0 %v1091
      %1410 = vmatprep.subr.mxu0 %v1096
      %1411 = vmatpush1.msra.mxu0 %v1095
      %1412 = vmatprep.subr.mxu0 %v1100
      %1413 = vmatpush1.msra.mxu0 %v1099
      %1414 = vmatprep.subr.mxu0 %v1104
      %1415 = vmatpush1.msra.mxu0 %v1103
      %1416 = vmatprep.subr.mxu0 %v1108
      %1417 = vmatpush1.msra.mxu0 %v1107
      %1418 = vmatprep.subr.mxu0 %v1112
      %1419 = vmatpush1.msra.mxu0 %v1111
      %1420 = vmatprep.subr.mxu0 %v1116
      %1421 = vmatpush1.msra.mxu0 %v1115
      %1422 = vmatprep.subr.mxu0 %v1120
      %1423 = vmatpush1.msra.mxu0 %v1119
      %1424 = vmatprep.subr.mxu0 %v1124
      %1425 = vmatpush1.msra.mxu0 %v1123
      %1426 = vmatprep.subr.mxu0 %v1128
      %1427 = vmatpush1.msra.mxu0 %v1127
      %1428 = vmatprep.mubr.f32.mxu0 %v1146
      %1429 = vmatmul.mubr.f32.gmra.mrb[0].mxu0 %v1144
      %v1430 = vpop.f32.mrb[0].mxu0
      %v1431 = vadd.f32 %v1360, %v1430
      %v1432 = vpop.f32.mrb[0].mxu0
      %v1433 = vadd.f32 %v1362, %v1432
      %1434 = vdwg.mxu0
      %v1435 = vadd.f32 %v797, %v1289
      %v1436 = vadd.f32 %v799, %v1291
      %v1437 = vadd.f32 %v868, %v1431
      %v1438 = vadd.f32 %v870, %v1433
      %v1443 = vcombine.low %v1435, %v1436
      %v1444 = vcombine.low %v1437, %v1438
      %v1446 = vunpack.c.l.s4 1983009808
      %v1447 = vunpack.c.0.s8 %v1446
      %v1448 = vlaneseq
      %v1449 = vshrl.u32 %v1448, 7
      %v1450 = vsub.s32 %v1447, %v1449
      %v1451 = vrot.slane %v1443, %v1450
      %v1453 = vunpack.c.l.s4 1983009808
      %v1454 = vunpack.c.0.s8 %v1453
      %v1455 = vlaneseq
      %v1456 = vshrl.u32 %v1455, 7
      %v1457 = vsub.s32 %v1454, %v1456
      %v1458 = vrot.slane %v1444, %v1457
      %v1459 = vcombine.low %v1451, %v1458
      %1461 = vst [vmem:[%s413] sm:$0xff] %v1459
      %1462 = vrot.lane.b32.xlu0 %v1438, 4
      %v1463 = vpop.permute.xlu0 %1462
      %vm1465 = vcmask 25600
      %1466 = vst.msk [vmem:[#allocation2] sm:$0x3] %vm1465, %v1463
      %v1467 = vld [vmem:[%s3] sm:$0xff]
      %v1468 = vld [vmem:[%s3 + $0x8] sm:$0xff]
      %v1469 = vld [vmem:[%s3 + $0x10] sm:$0xff]
      %v1470 = vld [vmem:[%s3 + $0x18] sm:$0xff]
      %v1471 = vld [vmem:[%s3 + $0x20] sm:$0xff]
      %v1472 = vld [vmem:[%s3 + $0x28] sm:$0xff]
      %v1473 = vld [vmem:[%s3 + $0x30] sm:$0xff]
      %v1474 = vld [vmem:[%s3 + $0x38] sm:$0xff]
      %v1475 = vld [vmem:[%s3 + $0x40] sm:$0xff]
      %v1476 = vld [vmem:[%s3 + $0x48] sm:$0xff]
      %v1477 = vld [vmem:[%s3 + $0x50] sm:$0xff]
      %v1478 = vld [vmem:[%s3 + $0x58] sm:$0xff]
      %v1479 = vld [vmem:[%s3 + $0x60] sm:$0xff]
      %v1480 = vld [vmem:[%s3 + $0x68] sm:$0xff]
      %v1481 = vld [vmem:[%s3 + $0x70] sm:$0xff]
      %v1482 = vld [vmem:[%s3 + $0x78] sm:$0xff]
      %v1483 = vld [vmem:[%s3 + $0x80] sm:$0xff]
      %v1484 = vld [vmem:[%s3 + $0x88] sm:$0xff]
      %v1485 = vld [vmem:[%s3 + $0x90] sm:$0xff]
      %v1486 = vld [vmem:[%s3 + $0x98] sm:$0xff]
      %v1487 = vld [vmem:[%s3 + $0xa0] sm:$0xff]
      %v1488 = vld [vmem:[%s3 + $0xa8] sm:$0xff]
      %v1489 = vld [vmem:[%s3 + $0xb0] sm:$0xff]
      %v1490 = vld [vmem:[%s3 + $0xb8] sm:$0xff]
      %v1491 = vld [vmem:[%s3 + $0xc0] sm:$0xff]
      %v1492 = vld [vmem:[%s3 + $0xc8] sm:$0xff]
      %v1493 = vld [vmem:[%s3 + $0xd0] sm:$0xff]
      %v1494 = vld [vmem:[%s3 + $0xd8] sm:$0xff]
      %v1495 = vld [vmem:[%s3 + $0xe0] sm:$0xff]
      %v1496 = vld [vmem:[%s3 + $0xe8] sm:$0xff]
      %v1497 = vld [vmem:[%s3 + $0xf0] sm:$0xff]
      %v1498 = vld [vmem:[%s3 + $0xf8] sm:$0xff]
      %v1499 = vld [vmem:[%s3 + $0x100] sm:$0xff]
      %v1500 = vld [vmem:[%s3 + $0x108] sm:$0xff]
      %v1501 = vld [vmem:[%s3 + $0x110] sm:$0xff]
      %v1502 = vld [vmem:[%s3 + $0x118] sm:$0xff]
      %v1503 = vld [vmem:[%s3 + $0x120] sm:$0xff]
      %v1504 = vld [vmem:[%s3 + $0x128] sm:$0xff]
      %v1505 = vld [vmem:[%s3 + $0x130] sm:$0xff]
      %v1506 = vld [vmem:[%s3 + $0x138] sm:$0xff]
      %v1507 = vld [vmem:[%s3 + $0x140] sm:$0xff]
      %v1508 = vld [vmem:[%s3 + $0x148] sm:$0xff]
      %v1509 = vld [vmem:[%s3 + $0x150] sm:$0xff]
      %v1510 = vld [vmem:[%s3 + $0x158] sm:$0xff]
      %v1511 = vld [vmem:[%s3 + $0x160] sm:$0xff]
      %v1512 = vld [vmem:[%s3 + $0x168] sm:$0xff]
      %v1513 = vld [vmem:[%s3 + $0x170] sm:$0xff]
      %v1514 = vld [vmem:[%s3 + $0x178] sm:$0xff]
      %v1515 = vld [vmem:[%s3 + $0x180] sm:$0xff]
      %v1516 = vld [vmem:[%s3 + $0x188] sm:$0xff]
      %v1517 = vld [vmem:[%s3 + $0x190] sm:$0xff]
      %v1518 = vld [vmem:[%s3 + $0x198] sm:$0xff]
      %v1519 = vld [vmem:[%s3 + $0x1a0] sm:$0xff]
      %v1520 = vld [vmem:[%s3 + $0x1a8] sm:$0xff]
      %v1521 = vld [vmem:[%s3 + $0x1b0] sm:$0xff]
      %v1522 = vld [vmem:[%s3 + $0x1b8] sm:$0xff]
      %v1523 = vld [vmem:[%s3 + $0x1c0] sm:$0xff]
      %v1524 = vld [vmem:[%s3 + $0x1c8] sm:$0xff]
      %v1525 = vld [vmem:[%s3 + $0x1d0] sm:$0xff]
      %v1526 = vld [vmem:[%s3 + $0x1d8] sm:$0xff]
      %v1527 = vld [vmem:[%s3 + $0x1e0] sm:$0xff]
      %v1528 = vld [vmem:[%s3 + $0x1e8] sm:$0xff]
      %v1529 = vld [vmem:[%s3 + $0x1f0] sm:$0xff]
      %v1530 = vld [vmem:[%s3 + $0x1f8] sm:$0xff]
      %v1531 = vld [vmem:[%s3 + $0x200] sm:$0xff]
      %v1532 = vld [vmem:[%s3 + $0x208] sm:$0xff]
      %v1533 = vld [vmem:[%s3 + $0x210] sm:$0xff]
      %v1534 = vld [vmem:[%s3 + $0x218] sm:$0xff]
      %v1535 = vld [vmem:[%s3 + $0x220] sm:$0xff]
      %v1536 = vld [vmem:[%s3 + $0x228] sm:$0xff]
      %v1537 = vld [vmem:[%s3 + $0x230] sm:$0xff]
      %v1538 = vld [vmem:[%s3 + $0x238] sm:$0xff]
      %v1539 = vld [vmem:[%s3 + $0x240] sm:$0xff]
      %v1540 = vld [vmem:[%s3 + $0x248] sm:$0xff]
      %v1541 = vld [vmem:[%s3 + $0x250] sm:$0xff]
      %v1542 = vld [vmem:[%s3 + $0x258] sm:$0xff]
      %v1543 = vld [vmem:[%s3 + $0x260] sm:$0xff]
      %v1544 = vld [vmem:[%s3 + $0x268] sm:$0xff]
      %v1545 = vld [vmem:[%s3 + $0x270] sm:$0xff]
      %v1546 = vld [vmem:[%s3 + $0x278] sm:$0xff]
      %v1547 = vld [vmem:[%s3 + $0x280] sm:$0xff]
      %v1548 = vld [vmem:[%s3 + $0x288] sm:$0xff]
      %v1549 = vld [vmem:[%s3 + $0x290] sm:$0xff]
      %v1550 = vld [vmem:[%s3 + $0x298] sm:$0xff]
      %v1551 = vld [vmem:[%s3 + $0x2a0] sm:$0xff]
      %v1552 = vld [vmem:[%s3 + $0x2a8] sm:$0xff]
      %v1553 = vld [vmem:[%s3 + $0x2b0] sm:$0xff]
      %v1554 = vld [vmem:[%s3 + $0x2b8] sm:$0xff]
      %v1555 = vld [vmem:[%s3 + $0x2c0] sm:$0xff]
      %v1556 = vld [vmem:[%s3 + $0x2c8] sm:$0xff]
      %v1557 = vld [vmem:[%s3 + $0x2d0] sm:$0xff]
      %v1558 = vld [vmem:[%s3 + $0x2d8] sm:$0xff]
      %v1559 = vld [vmem:[%s3 + $0x2e0] sm:$0xff]
      %v1560 = vld [vmem:[%s3 + $0x2e8] sm:$0xff]
      %v1561 = vld [vmem:[%s3 + $0x2f0] sm:$0xff]
      %v1562 = vld [vmem:[%s3 + $0x2f8] sm:$0xff]
      %v1563 = vld [vmem:[%s3 + $0x300] sm:$0xff]
      %v1564 = vld [vmem:[%s3 + $0x308] sm:$0xff]
      %v1565 = vld [vmem:[%s3 + $0x310] sm:$0xff]
      %v1566 = vld [vmem:[%s3 + $0x318] sm:$0xff]
      %v1567 = vld [vmem:[%s3 + $0x320] sm:$0xff]
      %v1568 = vld [vmem:[%s3 + $0x328] sm:$0xff]
      %v1569 = vld [vmem:[%s3 + $0x330] sm:$0xff]
      %v1570 = vld [vmem:[%s3 + $0x338] sm:$0xff]
      %v1571 = vld [vmem:[%s3 + $0x340] sm:$0xff]
      %v1572 = vld [vmem:[%s3 + $0x348] sm:$0xff]
      %v1573 = vld [vmem:[%s3 + $0x350] sm:$0xff]
      %v1574 = vld [vmem:[%s3 + $0x358] sm:$0xff]
      %v1575 = vld [vmem:[%s3 + $0x360] sm:$0xff]
      %v1576 = vld [vmem:[%s3 + $0x368] sm:$0xff]
      %v1577 = vld [vmem:[%s3 + $0x370] sm:$0xff]
      %v1578 = vld [vmem:[%s3 + $0x378] sm:$0xff]
      %v1579 = vld [vmem:[%s3 + $0x380] sm:$0xff]
      %v1580 = vld [vmem:[%s3 + $0x388] sm:$0xff]
      %v1581 = vld [vmem:[%s3 + $0x390] sm:$0xff]
      %v1582 = vld [vmem:[%s3 + $0x398] sm:$0xff]
      %v1583 = vld [vmem:[%s3 + $0x3a0] sm:$0xff]
      %v1584 = vld [vmem:[%s3 + $0x3a8] sm:$0xff]
      %v1585 = vld [vmem:[%s3 + $0x3b0] sm:$0xff]
      %v1586 = vld [vmem:[%s3 + $0x3b8] sm:$0xff]
      %v1587 = vld [vmem:[%s3 + $0x3c0] sm:$0xff]
      %v1588 = vld [vmem:[%s3 + $0x3c8] sm:$0xff]
      %v1589 = vld [vmem:[%s3 + $0x3d0] sm:$0xff]
      %v1590 = vld [vmem:[%s3 + $0x3d8] sm:$0xff]
      %v1591 = vld [vmem:[%s3 + $0x3e0] sm:$0xff]
      %v1592 = vld [vmem:[%s3 + $0x3e8] sm:$0xff]
      %v1593 = vld [vmem:[%s3 + $0x3f0] sm:$0xff]
      %v1594 = vld [vmem:[%s3 + $0x3f8] sm:$0xff]
      %v1595 = vld [vmem:[%s3 + $0x400] sm:$0xff]
      %v1596 = vld [vmem:[%s3 + $0x408] sm:$0xff]
      %v1597 = vld [vmem:[%s3 + $0x410] sm:$0xff]
      %v1598 = vld [vmem:[%s3 + $0x418] sm:$0xff]
      %v1599 = vld [vmem:[%s3 + $0x420] sm:$0xff]
      %v1600 = vld [vmem:[%s3 + $0x428] sm:$0xff]
      %v1601 = vld [vmem:[%s3 + $0x430] sm:$0xff]
      %v1602 = vld [vmem:[%s3 + $0x438] sm:$0xff]
      %v1603 = vld [vmem:[%s3 + $0x440] sm:$0xff]
      %v1604 = vld [vmem:[%s3 + $0x448] sm:$0xff]
      %v1605 = vld [vmem:[%s3 + $0x450] sm:$0xff]
      %v1606 = vld [vmem:[%s3 + $0x458] sm:$0xff]
      %v1607 = vld [vmem:[%s3 + $0x460] sm:$0xff]
      %v1608 = vld [vmem:[%s3 + $0x468] sm:$0xff]
      %v1609 = vld [vmem:[%s3 + $0x470] sm:$0xff]
      %v1610 = vld [vmem:[%s3 + $0x478] sm:$0xff]
      %v1611 = vld [vmem:[%s3 + $0x480] sm:$0xff]
      %v1612 = vld [vmem:[%s3 + $0x488] sm:$0xff]
      %v1613 = vld [vmem:[%s3 + $0x490] sm:$0xff]
      %v1614 = vld [vmem:[%s3 + $0x498] sm:$0xff]
      %v1615 = vld [vmem:[%s3 + $0x4a0] sm:$0xff]
      %v1616 = vld [vmem:[%s3 + $0x4a8] sm:$0xff]
      %v1617 = vld [vmem:[%s3 + $0x4b0] sm:$0xff]
      %v1618 = vld [vmem:[%s3 + $0x4b8] sm:$0xff]
      %v1619 = vld [vmem:[%s3 + $0x4c0] sm:$0xff]
      %v1620 = vld [vmem:[%s3 + $0x4c8] sm:$0xff]
      %v1621 = vld [vmem:[%s3 + $0x4d0] sm:$0xff]
      %v1622 = vld [vmem:[%s3 + $0x4d8] sm:$0xff]
      %v1623 = vld [vmem:[%s3 + $0x4e0] sm:$0xff]
      %v1624 = vld [vmem:[%s3 + $0x4e8] sm:$0xff]
      %v1625 = vld [vmem:[%s3 + $0x4f0] sm:$0xff]
      %v1626 = vld [vmem:[%s3 + $0x4f8] sm:$0xff]
      %v1627 = vld [vmem:[%s3 + $0x500] sm:$0xff]
      %v1628 = vld [vmem:[%s3 + $0x508] sm:$0xff]
      %v1629 = vld [vmem:[%s3 + $0x510] sm:$0xff]
      %v1630 = vld [vmem:[%s3 + $0x518] sm:$0xff]
      %v1631 = vld [vmem:[%s3 + $0x520] sm:$0xff]
      %v1632 = vld [vmem:[%s3 + $0x528] sm:$0xff]
      %v1633 = vld [vmem:[%s3 + $0x530] sm:$0xff]
      %v1634 = vld [vmem:[%s3 + $0x538] sm:$0xff]
      %v1635 = vld [vmem:[%s3 + $0x540] sm:$0xff]
      %v1636 = vld [vmem:[%s3 + $0x548] sm:$0xff]
      %v1637 = vld [vmem:[%s3 + $0x550] sm:$0xff]
      %v1638 = vld [vmem:[%s3 + $0x558] sm:$0xff]
      %v1639 = vld [vmem:[%s3 + $0x560] sm:$0xff]
      %v1640 = vld [vmem:[%s3 + $0x568] sm:$0xff]
      %v1641 = vld [vmem:[%s3 + $0x570] sm:$0xff]
      %v1642 = vld [vmem:[%s3 + $0x578] sm:$0xff]
      %v1643 = vld [vmem:[%s3 + $0x580] sm:$0xff]
      %v1644 = vld [vmem:[%s3 + $0x588] sm:$0xff]
      %v1645 = vld [vmem:[%s3 + $0x590] sm:$0xff]
      %v1646 = vld [vmem:[%s3 + $0x598] sm:$0xff]
      %v1647 = vld [vmem:[%s3 + $0x5a0] sm:$0xff]
      %v1648 = vld [vmem:[%s3 + $0x5a8] sm:$0xff]
      %v1649 = vld [vmem:[%s3 + $0x5b0] sm:$0xff]
      %v1650 = vld [vmem:[%s3 + $0x5b8] sm:$0xff]
      %v1651 = vld [vmem:[%s3 + $0x5c0] sm:$0xff]
      %v1652 = vld [vmem:[%s3 + $0x5c8] sm:$0xff]
      %v1653 = vld [vmem:[%s3 + $0x5d0] sm:$0xff]
      %v1654 = vld [vmem:[%s3 + $0x5d8] sm:$0xff]
      %v1655 = vld [vmem:[%s3 + $0x5e0] sm:$0xff]
      %v1656 = vld [vmem:[%s3 + $0x5e8] sm:$0xff]
      %v1657 = vld [vmem:[%s3 + $0x5f0] sm:$0xff]
      %v1658 = vld [vmem:[%s3 + $0x5f8] sm:$0xff]
      %v1659 = vld [vmem:[%s407] sm:$0x3f]
      %v1660 = vld [vmem:[%s4] sm:$0xff]
      %v1661 = vld [vmem:[%s4 + $0x8] sm:$0xff]
      %v1662 = vld [vmem:[%s4 + $0x10] sm:$0xff]
      %v1663 = vld [vmem:[%s4 + $0x18] sm:$0xff]
      %v1664 = vld [vmem:[%s4 + $0x20] sm:$0xff]
      %v1665 = vld [vmem:[%s4 + $0x28] sm:$0xff]
      %v1666 = vld [vmem:[%s4 + $0x30] sm:$0xff]
      %v1667 = vld [vmem:[%s4 + $0x38] sm:$0xff]
      %v1668 = vld [vmem:[%s4 + $0x40] sm:$0xff]
      %v1669 = vld [vmem:[%s4 + $0x48] sm:$0xff]
      %v1670 = vld [vmem:[%s4 + $0x50] sm:$0xff]
      %v1671 = vld [vmem:[%s4 + $0x58] sm:$0xff]
      %v1672 = vld [vmem:[%s4 + $0x60] sm:$0xff]
      %v1673 = vld [vmem:[%s4 + $0x68] sm:$0xff]
      %v1674 = vld [vmem:[%s4 + $0x70] sm:$0xff]
      %v1675 = vld [vmem:[%s4 + $0x78] sm:$0xff]
      %v1676 = vld [vmem:[%s4 + $0x80] sm:$0xff]
      %v1677 = vld [vmem:[%s4 + $0x88] sm:$0xff]
      %v1678 = vld [vmem:[%s4 + $0x90] sm:$0xff]
      %v1679 = vld [vmem:[%s4 + $0x98] sm:$0xff]
      %v1680 = vld [vmem:[%s4 + $0xa0] sm:$0xff]
      %v1681 = vld [vmem:[%s4 + $0xa8] sm:$0xff]
      %v1682 = vld [vmem:[%s4 + $0xb0] sm:$0xff]
      %v1683 = vld [vmem:[%s4 + $0xb8] sm:$0xff]
      %v1684 = vld [vmem:[%s4 + $0xc0] sm:$0xff]
      %v1685 = vld [vmem:[%s4 + $0xc8] sm:$0xff]
      %v1686 = vld [vmem:[%s4 + $0xd0] sm:$0xff]
      %v1687 = vld [vmem:[%s4 + $0xd8] sm:$0xff]
      %v1688 = vld [vmem:[%s4 + $0xe0] sm:$0xff]
      %v1689 = vld [vmem:[%s4 + $0xe8] sm:$0xff]
      %v1690 = vld [vmem:[%s4 + $0xf0] sm:$0xff]
      %v1691 = vld [vmem:[%s4 + $0xf8] sm:$0xff]
      %v1692 = vld [vmem:[%s4 + $0x100] sm:$0xff]
      %v1693 = vld [vmem:[%s4 + $0x108] sm:$0xff]
      %v1694 = vld [vmem:[%s4 + $0x110] sm:$0xff]
      %v1695 = vld [vmem:[%s4 + $0x118] sm:$0xff]
      %v1696 = vld [vmem:[%s4 + $0x120] sm:$0xff]
      %v1697 = vld [vmem:[%s4 + $0x128] sm:$0xff]
      %v1698 = vld [vmem:[%s4 + $0x130] sm:$0xff]
      %v1699 = vld [vmem:[%s4 + $0x138] sm:$0xff]
      %v1700 = vld [vmem:[%s4 + $0x140] sm:$0xff]
      %v1701 = vld [vmem:[%s4 + $0x148] sm:$0xff]
      %v1702 = vld [vmem:[%s4 + $0x150] sm:$0xff]
      %v1703 = vld [vmem:[%s4 + $0x158] sm:$0xff]
      %v1704 = vld [vmem:[%s4 + $0x160] sm:$0xff]
      %v1705 = vld [vmem:[%s4 + $0x168] sm:$0xff]
      %v1706 = vld [vmem:[%s4 + $0x170] sm:$0xff]
      %v1707 = vld [vmem:[%s4 + $0x178] sm:$0xff]
      %v1708 = vld [vmem:[%s4 + $0x180] sm:$0xff]
      %v1709 = vld [vmem:[%s4 + $0x188] sm:$0xff]
      %v1710 = vld [vmem:[%s4 + $0x190] sm:$0xff]
      %v1711 = vld [vmem:[%s4 + $0x198] sm:$0xff]
      %v1712 = vld [vmem:[%s4 + $0x1a0] sm:$0xff]
      %v1713 = vld [vmem:[%s4 + $0x1a8] sm:$0xff]
      %v1714 = vld [vmem:[%s4 + $0x1b0] sm:$0xff]
      %v1715 = vld [vmem:[%s4 + $0x1b8] sm:$0xff]
      %v1716 = vld [vmem:[%s4 + $0x1c0] sm:$0xff]
      %v1717 = vld [vmem:[%s4 + $0x1c8] sm:$0xff]
      %v1718 = vld [vmem:[%s4 + $0x1d0] sm:$0xff]
      %v1719 = vld [vmem:[%s4 + $0x1d8] sm:$0xff]
      %v1720 = vld [vmem:[%s4 + $0x1e0] sm:$0xff]
      %v1721 = vld [vmem:[%s4 + $0x1e8] sm:$0xff]
      %v1722 = vld [vmem:[%s4 + $0x1f0] sm:$0xff]
      %v1723 = vld [vmem:[%s4 + $0x1f8] sm:$0xff]
      %v1724 = vld [vmem:[%s4 + $0x200] sm:$0xff]
      %v1725 = vld [vmem:[%s4 + $0x208] sm:$0xff]
      %v1726 = vld [vmem:[%s4 + $0x210] sm:$0xff]
      %v1727 = vld [vmem:[%s4 + $0x218] sm:$0xff]
      %v1728 = vld [vmem:[%s4 + $0x220] sm:$0xff]
      %v1729 = vld [vmem:[%s4 + $0x228] sm:$0xff]
      %v1730 = vld [vmem:[%s4 + $0x230] sm:$0xff]
      %v1731 = vld [vmem:[%s4 + $0x238] sm:$0xff]
      %v1732 = vld [vmem:[%s4 + $0x240] sm:$0xff]
      %v1733 = vld [vmem:[%s4 + $0x248] sm:$0xff]
      %v1734 = vld [vmem:[%s4 + $0x250] sm:$0xff]
      %v1735 = vld [vmem:[%s4 + $0x258] sm:$0xff]
      %v1736 = vld [vmem:[%s4 + $0x260] sm:$0xff]
      %v1737 = vld [vmem:[%s4 + $0x268] sm:$0xff]
      %v1738 = vld [vmem:[%s4 + $0x270] sm:$0xff]
      %v1739 = vld [vmem:[%s4 + $0x278] sm:$0xff]
      %v1740 = vld [vmem:[%s4 + $0x280] sm:$0xff]
      %v1741 = vld [vmem:[%s4 + $0x288] sm:$0xff]
      %v1742 = vld [vmem:[%s4 + $0x290] sm:$0xff]
      %v1743 = vld [vmem:[%s4 + $0x298] sm:$0xff]
      %v1744 = vld [vmem:[%s4 + $0x2a0] sm:$0xff]
      %v1745 = vld [vmem:[%s4 + $0x2a8] sm:$0xff]
      %v1746 = vld [vmem:[%s4 + $0x2b0] sm:$0xff]
      %v1747 = vld [vmem:[%s4 + $0x2b8] sm:$0xff]
      %v1748 = vld [vmem:[%s4 + $0x2c0] sm:$0xff]
      %v1749 = vld [vmem:[%s4 + $0x2c8] sm:$0xff]
      %v1750 = vld [vmem:[%s4 + $0x2d0] sm:$0xff]
      %v1751 = vld [vmem:[%s4 + $0x2d8] sm:$0xff]
      %v1752 = vld [vmem:[%s4 + $0x2e0] sm:$0xff]
      %v1753 = vld [vmem:[%s4 + $0x2e8] sm:$0xff]
      %v1754 = vld [vmem:[%s4 + $0x2f0] sm:$0xff]
      %v1755 = vld [vmem:[%s4 + $0x2f8] sm:$0xff]
      %v1756 = vld [vmem:[%s4 + $0x300] sm:$0xff]
      %v1757 = vld [vmem:[%s4 + $0x308] sm:$0xff]
      %v1758 = vld [vmem:[%s4 + $0x310] sm:$0xff]
      %v1759 = vld [vmem:[%s4 + $0x318] sm:$0xff]
      %v1760 = vld [vmem:[%s4 + $0x320] sm:$0xff]
      %v1761 = vld [vmem:[%s4 + $0x328] sm:$0xff]
      %v1762 = vld [vmem:[%s4 + $0x330] sm:$0xff]
      %v1763 = vld [vmem:[%s4 + $0x338] sm:$0xff]
      %v1764 = vld [vmem:[%s4 + $0x340] sm:$0xff]
      %v1765 = vld [vmem:[%s4 + $0x348] sm:$0xff]
      %v1766 = vld [vmem:[%s4 + $0x350] sm:$0xff]
      %v1767 = vld [vmem:[%s4 + $0x358] sm:$0xff]
      %v1768 = vld [vmem:[%s4 + $0x360] sm:$0xff]
      %v1769 = vld [vmem:[%s4 + $0x368] sm:$0xff]
      %v1770 = vld [vmem:[%s4 + $0x370] sm:$0xff]
      %v1771 = vld [vmem:[%s4 + $0x378] sm:$0xff]
      %v1772 = vld [vmem:[%s4 + $0x380] sm:$0xff]
      %v1773 = vld [vmem:[%s4 + $0x388] sm:$0xff]
      %v1774 = vld [vmem:[%s4 + $0x390] sm:$0xff]
      %v1775 = vld [vmem:[%s4 + $0x398] sm:$0xff]
      %v1776 = vld [vmem:[%s4 + $0x3a0] sm:$0xff]
      %v1777 = vld [vmem:[%s4 + $0x3a8] sm:$0xff]
      %v1778 = vld [vmem:[%s4 + $0x3b0] sm:$0xff]
      %v1779 = vld [vmem:[%s4 + $0x3b8] sm:$0xff]
      %v1780 = vld [vmem:[%s4 + $0x3c0] sm:$0xff]
      %v1781 = vld [vmem:[%s4 + $0x3c8] sm:$0xff]
      %v1782 = vld [vmem:[%s4 + $0x3d0] sm:$0xff]
      %v1783 = vld [vmem:[%s4 + $0x3d8] sm:$0xff]
      %v1784 = vld [vmem:[%s4 + $0x3e0] sm:$0xff]
      %v1785 = vld [vmem:[%s4 + $0x3e8] sm:$0xff]
      %v1786 = vld [vmem:[%s4 + $0x3f0] sm:$0xff]
      %v1787 = vld [vmem:[%s4 + $0x3f8] sm:$0xff]
      %v1788 = vld [vmem:[%s4 + $0x400] sm:$0xff]
      %v1789 = vld [vmem:[%s4 + $0x408] sm:$0xff]
      %v1790 = vld [vmem:[%s4 + $0x410] sm:$0xff]
      %v1791 = vld [vmem:[%s4 + $0x418] sm:$0xff]
      %v1792 = vld [vmem:[%s4 + $0x420] sm:$0xff]
      %v1793 = vld [vmem:[%s4 + $0x428] sm:$0xff]
      %v1794 = vld [vmem:[%s4 + $0x430] sm:$0xff]
      %v1795 = vld [vmem:[%s4 + $0x438] sm:$0xff]
      %v1796 = vld [vmem:[%s4 + $0x440] sm:$0xff]
      %v1797 = vld [vmem:[%s4 + $0x448] sm:$0xff]
      %v1798 = vld [vmem:[%s4 + $0x450] sm:$0xff]
      %v1799 = vld [vmem:[%s4 + $0x458] sm:$0xff]
      %v1800 = vld [vmem:[%s4 + $0x460] sm:$0xff]
      %v1801 = vld [vmem:[%s4 + $0x468] sm:$0xff]
      %v1802 = vld [vmem:[%s4 + $0x470] sm:$0xff]
      %v1803 = vld [vmem:[%s4 + $0x478] sm:$0xff]
      %v1805 = vcombine.high %v1659, %v1659
      %v1807 = vunpack.c.l.s4 1983009808
      %v1808 = vunpack.c.0.s8 %v1807
      %v1809 = vlaneseq
      %v1810 = vshrl.u32 %v1809, 7
      %v1811 = vsub.s32 %v1808, %v1810
      %v1812 = vrot.slane %v1659, %v1811
      %v1814 = vunpack.c.l.s4 1983009808
      %v1815 = vunpack.c.0.s8 %v1814
      %v1816 = vlaneseq
      %v1817 = vshrl.u32 %v1816, 7
      %v1818 = vsub.s32 %v1815, %v1817
      %v1819 = vrot.slane %v1805, %v1818
      %v1820 = vcombine.high %v1812, %v1812
      %1824 = vmatprep.subr.mxu0 %v1661
      %1825 = vmatpush1.msra.mxu0 %v1660
      %1826 = vmatprep.subr.mxu0 %v1664
      %1827 = vmatpush1.msra.mxu0 %v1663
      %1828 = vmatprep.subr.mxu0 %v1667
      %1829 = vmatpush1.msra.mxu0 %v1666
      %1830 = vmatprep.subr.mxu0 %v1670
      %1831 = vmatpush1.msra.mxu0 %v1669
      %1832 = vmatprep.subr.mxu0 %v1673
      %1833 = vmatpush1.msra.mxu0 %v1672
      %1834 = vmatprep.subr.mxu0 %v1676
      %1835 = vmatpush1.msra.mxu0 %v1675
      %1836 = vmatprep.subr.mxu0 %v1679
      %1837 = vmatpush1.msra.mxu0 %v1678
      %1838 = vmatprep.subr.mxu0 %v1682
      %1839 = vmatpush1.msra.mxu0 %v1681
      %1840 = vmatprep.subr.mxu0 %v1685
      %1841 = vmatpush1.msra.mxu0 %v1684
      %1842 = vmatprep.subr.mxu0 %v1688
      %1843 = vmatpush1.msra.mxu0 %v1687
      %1844 = vmatprep.subr.mxu0 %v1691
      %1845 = vmatpush1.msra.mxu0 %v1690
      %1846 = vmatprep.subr.mxu0 %v1694
      %1847 = vmatpush1.msra.mxu0 %v1693
      %1848 = vmatprep.subr.mxu0 %v1697
      %1849 = vmatpush1.msra.mxu0 %v1696
      %1850 = vmatprep.subr.mxu0 %v1700
      %1851 = vmatpush1.msra.mxu0 %v1699
      %1852 = vmatprep.subr.mxu0 %v1703
      %1853 = vmatpush1.msra.mxu0 %v1702
      %1854 = vmatprep.subr.mxu0 %v1706
      %1855 = vmatpush1.msra.mxu0 %v1705
      %1856 = vmatprep.subr.mxu0 %v1709
      %1857 = vmatpush1.msra.mxu0 %v1708
      %1858 = vmatprep.subr.mxu0 %v1712
      %1859 = vmatpush1.msra.mxu0 %v1711
      %1860 = vmatprep.subr.mxu0 %v1715
      %1861 = vmatpush1.msra.mxu0 %v1714
      %1862 = vmatprep.subr.mxu0 %v1718
      %1863 = vmatpush1.msra.mxu0 %v1717
      %1864 = vmatprep.subr.mxu0 %v1721
      %1865 = vmatpush1.msra.mxu0 %v1720
      %1866 = vmatprep.subr.mxu0 %v1724
      %1867 = vmatpush1.msra.mxu0 %v1723
      %1868 = vmatprep.subr.mxu0 %v1727
      %1869 = vmatpush1.msra.mxu0 %v1726
      %1870 = vmatprep.subr.mxu0 %v1730
      %1871 = vmatpush1.msra.mxu0 %v1729
      %1872 = vmatprep.subr.mxu0 %v1733
      %1873 = vmatpush1.msra.mxu0 %v1732
      %1874 = vmatprep.subr.mxu0 %v1736
      %1875 = vmatpush1.msra.mxu0 %v1735
      %1876 = vmatprep.subr.mxu0 %v1739
      %1877 = vmatpush1.msra.mxu0 %v1738
      %1878 = vmatprep.subr.mxu0 %v1742
      %1879 = vmatpush1.msra.mxu0 %v1741
      %1880 = vmatprep.subr.mxu0 %v1745
      %1881 = vmatpush1.msra.mxu0 %v1744
      %1882 = vmatprep.subr.mxu0 %v1748
      %1883 = vmatpush1.msra.mxu0 %v1747
      %1884 = vmatprep.subr.mxu0 %v1751
      %1885 = vmatpush1.msra.mxu0 %v1750
      %1886 = vmatprep.subr.mxu0 %v1754
      %1887 = vmatpush1.msra.mxu0 %v1753
      %1888 = vmatprep.mubr.f32.mxu0 %v1820
      %1889 = vmatmul.mubr.f32.gmra.mrb[0].mxu0 %v1812
      %v1890 = vpop.f32.mrb[0].mxu0
      %v1891 = vadd.f32 0.0, %v1890
      %v1892 = vpop.f32.mrb[0].mxu0
      %v1893 = vadd.f32 0.0, %v1892
      %1894 = vdwg.mxu0
      %1895 = vmatprep.subr.mxu0 %v1757
      %1896 = vmatpush1.msra.mxu0 %v1756
      %1897 = vmatprep.subr.mxu0 %v1760
      %1898 = vmatpush1.msra.mxu0 %v1759
      %1899 = vmatprep.subr.mxu0 %v1763
      %1900 = vmatpush1.msra.mxu0 %v1762
      %1901 = vmatprep.subr.mxu0 %v1766
      %1902 = vmatpush1.msra.mxu0 %v1765
      %1903 = vmatprep.subr.mxu0 %v1769
      %1904 = vmatpush1.msra.mxu0 %v1768
      %1905 = vmatprep.subr.mxu0 %v1772
      %1906 = vmatpush1.msra.mxu0 %v1771
      %1907 = vmatprep.subr.mxu0 %v1775
      %1908 = vmatpush1.msra.mxu0 %v1774
      %1909 = vmatprep.subr.mxu0 %v1778
      %1910 = vmatpush1.msra.mxu0 %v1777
      %1911 = vmatprep.subr.mxu0 %v1781
      %1912 = vmatpush1.msra.mxu0 %v1780
      %1913 = vmatprep.subr.mxu0 %v1784
      %1914 = vmatpush1.msra.mxu0 %v1783
      %1915 = vmatprep.subr.mxu0 %v1787
      %1916 = vmatpush1.msra.mxu0 %v1786
      %1917 = vmatprep.subr.mxu0 %v1790
      %1918 = vmatpush1.msra.mxu0 %v1789
      %1919 = vmatprep.subr.mxu0 %v1793
      %1920 = vmatpush1.msra.mxu0 %v1792
      %1921 = vmatprep.subr.mxu0 %v1796
      %1922 = vmatpush1.msra.mxu0 %v1795
      %1923 = vmatprep.subr.mxu0 %v1799
      %1924 = vmatpush1.msra.mxu0 %v1798
      %1925 = vmatprep.subr.mxu0 %v1802
      %1926 = vmatpush1.msra.mxu0 %v1801
      %1927 = vmatprep.subr.mxu0 0.0
      %1928 = vmatpush1.msra.mxu0 0.0
      %1929 = vmatprep.subr.mxu0 0.0
      %1930 = vmatpush1.msra.mxu0 0.0
      %1931 = vmatprep.subr.mxu0 0.0
      %1932 = vmatpush1.msra.mxu0 0.0
      %1933 = vmatprep.subr.mxu0 0.0
      %1934 = vmatpush1.msra.mxu0 0.0
      %1935 = vmatprep.subr.mxu0 0.0
      %1936 = vmatpush1.msra.mxu0 0.0
      %1937 = vmatprep.subr.mxu0 0.0
      %1938 = vmatpush1.msra.mxu0 0.0
      %1939 = vmatprep.subr.mxu0 0.0
      %1940 = vmatpush1.msra.mxu0 0.0
      %1941 = vmatprep.subr.mxu0 0.0
      %1942 = vmatpush1.msra.mxu0 0.0
      %1943 = vmatprep.subr.mxu0 0.0
      %1944 = vmatpush1.msra.mxu0 0.0
      %1945 = vmatprep.subr.mxu0 0.0
      %1946 = vmatpush1.msra.mxu0 0.0
      %1947 = vmatprep.subr.mxu0 0.0
      %1948 = vmatpush1.msra.mxu0 0.0
      %1949 = vmatprep.subr.mxu0 0.0
      %1950 = vmatpush1.msra.mxu0 0.0
      %1951 = vmatprep.subr.mxu0 0.0
      %1952 = vmatpush1.msra.mxu0 0.0
      %1953 = vmatprep.subr.mxu0 0.0
      %1954 = vmatpush1.msra.mxu0 0.0
      %1955 = vmatprep.subr.mxu0 0.0
      %1956 = vmatpush1.msra.mxu0 0.0
      %1957 = vmatprep.subr.mxu0 0.0
      %1958 = vmatpush1.msra.mxu0 0.0
      %1959 = vmatprep.mubr.f32.mxu0 0.0
      %1960 = vmatmul.mubr.f32.gmra.mrb[0].mxu0 %v1819
      %v1961 = vpop.f32.mrb[0].mxu0
      %v1962 = vadd.f32 %v1891, %v1961
      %v1963 = vpop.f32.mrb[0].mxu0
      %v1964 = vadd.f32 %v1893, %v1963
      %1965 = vdwg.mxu0
      %1966 = vmatprep.subr.mxu0 0.0
      %1967 = vmatpush1.msra.mxu0 %v1662
      %1968 = vmatprep.subr.mxu0 0.0
      %1969 = vmatpush1.msra.mxu0 %v1665
      %1970 = vmatprep.subr.mxu0 0.0
      %1971 = vmatpush1.msra.mxu0 %v1668
      %1972 = vmatprep.subr.mxu0 0.0
      %1973 = vmatpush1.msra.mxu0 %v1671
      %1974 = vmatprep.subr.mxu0 0.0
      %1975 = vmatpush1.msra.mxu0 %v1674
      %1976 = vmatprep.subr.mxu0 0.0
      %1977 = vmatpush1.msra.mxu0 %v1677
      %1978 = vmatprep.subr.mxu0 0.0
      %1979 = vmatpush1.msra.mxu0 %v1680
      %1980 = vmatprep.subr.mxu0 0.0
      %1981 = vmatpush1.msra.mxu0 %v1683
      %1982 = vmatprep.subr.mxu0 0.0
      %1983 = vmatpush1.msra.mxu0 %v1686
      %1984 = vmatprep.subr.mxu0 0.0
      %1985 = vmatpush1.msra.mxu0 %v1689
      %1986 = vmatprep.subr.mxu0 0.0
      %1987 = vmatpush1.msra.mxu0 %v1692
      %1988 = vmatprep.subr.mxu0 0.0
      %1989 = vmatpush1.msra.mxu0 %v1695
      %1990 = vmatprep.subr.mxu0 0.0
      %1991 = vmatpush1.msra.mxu0 %v1698
      %1992 = vmatprep.subr.mxu0 0.0
      %1993 = vmatpush1.msra.mxu0 %v1701
      %1994 = vmatprep.subr.mxu0 0.0
      %1995 = vmatpush1.msra.mxu0 %v1704
      %1996 = vmatprep.subr.mxu0 0.0
      %1997 = vmatpush1.msra.mxu0 %v1707
      %1998 = vmatprep.subr.mxu0 0.0
      %1999 = vmatpush1.msra.mxu0 %v1710
      %2000 = vmatprep.subr.mxu0 0.0
      %2001 = vmatpush1.msra.mxu0 %v1713
      %2002 = vmatprep.subr.mxu0 0.0
      %2003 = vmatpush1.msra.mxu0 %v1716
      %2004 = vmatprep.subr.mxu0 0.0
      %2005 = vmatpush1.msra.mxu0 %v1719
      %2006 = vmatprep.subr.mxu0 0.0
      %2007 = vmatpush1.msra.mxu0 %v1722
      %2008 = vmatprep.subr.mxu0 0.0
      %2009 = vmatpush1.msra.mxu0 %v1725
      %2010 = vmatprep.subr.mxu0 0.0
      %2011 = vmatpush1.msra.mxu0 %v1728
      %2012 = vmatprep.subr.mxu0 0.0
      %2013 = vmatpush1.msra.mxu0 %v1731
      %2014 = vmatprep.subr.mxu0 0.0
      %2015 = vmatpush1.msra.mxu0 %v1734
      %2016 = vmatprep.subr.mxu0 0.0
      %2017 = vmatpush1.msra.mxu0 %v1737
      %2018 = vmatprep.subr.mxu0 0.0
      %2019 = vmatpush1.msra.mxu0 %v1740
      %2020 = vmatprep.subr.mxu0 0.0
      %2021 = vmatpush1.msra.mxu0 %v1743
      %2022 = vmatprep.subr.mxu0 0.0
      %2023 = vmatpush1.msra.mxu0 %v1746
      %2024 = vmatprep.subr.mxu0 0.0
      %2025 = vmatpush1.msra.mxu0 %v1749
      %2026 = vmatprep.subr.mxu0 0.0
      %2027 = vmatpush1.msra.mxu0 %v1752
      %2028 = vmatprep.subr.mxu0 0.0
      %2029 = vmatpush1.msra.mxu0 %v1755
      %2030 = vmatprep.mubr.f32.mxu0 %v1820
      %2031 = vmatmul.mubr.f32.gmra.mrb[0].mxu0 %v1812
      %v2032 = vpop.f32.mrb[0].mxu0
      %v2033 = vadd.f32 0.0, %v2032
      %v2034 = vpop.f32.mrb[0].mxu0
      %2035 = vdwg.mxu0
      %2036 = vmatprep.subr.mxu0 0.0
      %2037 = vmatpush1.msra.mxu0 %v1758
      %2038 = vmatprep.subr.mxu0 0.0
      %2039 = vmatpush1.msra.mxu0 %v1761
      %2040 = vmatprep.subr.mxu0 0.0
      %2041 = vmatpush1.msra.mxu0 %v1764
      %2042 = vmatprep.subr.mxu0 0.0
      %2043 = vmatpush1.msra.mxu0 %v1767
      %2044 = vmatprep.subr.mxu0 0.0
      %2045 = vmatpush1.msra.mxu0 %v1770
      %2046 = vmatprep.subr.mxu0 0.0
      %2047 = vmatpush1.msra.mxu0 %v1773
      %2048 = vmatprep.subr.mxu0 0.0
      %2049 = vmatpush1.msra.mxu0 %v1776
      %2050 = vmatprep.subr.mxu0 0.0
      %2051 = vmatpush1.msra.mxu0 %v1779
      %2052 = vmatprep.subr.mxu0 0.0
      %2053 = vmatpush1.msra.mxu0 %v1782
      %2054 = vmatprep.subr.mxu0 0.0
      %2055 = vmatpush1.msra.mxu0 %v1785
      %2056 = vmatprep.subr.mxu0 0.0
      %2057 = vmatpush1.msra.mxu0 %v1788
      %2058 = vmatprep.subr.mxu0 0.0
      %2059 = vmatpush1.msra.mxu0 %v1791
      %2060 = vmatprep.subr.mxu0 0.0
      %2061 = vmatpush1.msra.mxu0 %v1794
      %2062 = vmatprep.subr.mxu0 0.0
      %2063 = vmatpush1.msra.mxu0 %v1797
      %2064 = vmatprep.subr.mxu0 0.0
      %2065 = vmatpush1.msra.mxu0 %v1800
      %2066 = vmatprep.subr.mxu0 0.0
      %2067 = vmatpush1.msra.mxu0 %v1803
      %2068 = vmatprep.subr.mxu0 0.0
      %2069 = vmatpush1.msra.mxu0 0.0
      %2070 = vmatprep.subr.mxu0 0.0
      %2071 = vmatpush1.msra.mxu0 0.0
      %2072 = vmatprep.subr.mxu0 0.0
      %2073 = vmatpush1.msra.mxu0 0.0
      %2074 = vmatprep.subr.mxu0 0.0
      %2075 = vmatpush1.msra.mxu0 0.0
      %2076 = vmatprep.subr.mxu0 0.0
      %2077 = vmatpush1.msra.mxu0 0.0
      %2078 = vmatprep.subr.mxu0 0.0
      %2079 = vmatpush1.msra.mxu0 0.0
      %2080 = vmatprep.subr.mxu0 0.0
      %2081 = vmatpush1.msra.mxu0 0.0
      %2082 = vmatprep.subr.mxu0 0.0
      %2083 = vmatpush1.msra.mxu0 0.0
      %2084 = vmatprep.subr.mxu0 0.0
      %2085 = vmatpush1.msra.mxu0 0.0
      %2086 = vmatprep.subr.mxu0 0.0
      %2087 = vmatpush1.msra.mxu0 0.0
      %2088 = vmatprep.subr.mxu0 0.0
      %2089 = vmatpush1.msra.mxu0 0.0
      %2090 = vmatprep.subr.mxu0 0.0
      %2091 = vmatpush1.msra.mxu0 0.0
      %2092 = vmatprep.subr.mxu0 0.0
      %2093 = vmatpush1.msra.mxu0 0.0
      %2094 = vmatprep.subr.mxu0 0.0
      %2095 = vmatpush1.msra.mxu0 0.0
      %2096 = vmatprep.subr.mxu0 0.0
      %2097 = vmatpush1.msra.mxu0 0.0
      %2098 = vmatprep.subr.mxu0 0.0
      %2099 = vmatpush1.msra.mxu0 0.0
      %2100 = vmatprep.mubr.f32.mxu0 0.0
      %2101 = vmatmul.mubr.f32.gmra.mrb[0].mxu0 %v1819
      %v2102 = vpop.f32.mrb[0].mxu0
      %v2103 = vadd.f32 %v2033, %v2102
      %v2104 = vpop.f32.mrb[0].mxu0
      %2105 = vdwg.mxu0
      %2106 = vmatprep.subr.mxu0 %v1468
      %2107 = vmatpush1.msra.mxu0 %v1467
      %2108 = vmatprep.subr.mxu0 %v1471
      %2109 = vmatpush1.msra.mxu0 %v1470
      %2110 = vmatprep.subr.mxu0 %v1474
      %2111 = vmatpush1.msra.mxu0 %v1473
      %2112 = vmatprep.subr.mxu0 %v1477
      %2113 = vmatpush1.msra.mxu0 %v1476
      %2114 = vmatprep.subr.mxu0 %v1480
      %2115 = vmatpush1.msra.mxu0 %v1479
      %2116 = vmatprep.subr.mxu0 %v1483
      %2117 = vmatpush1.msra.mxu0 %v1482
      %2118 = vmatprep.subr.mxu0 %v1486
      %2119 = vmatpush1.msra.mxu0 %v1485
      %2120 = vmatprep.subr.mxu0 %v1489
      %2121 = vmatpush1.msra.mxu0 %v1488
      %2122 = vmatprep.subr.mxu0 %v1492
      %2123 = vmatpush1.msra.mxu0 %v1491
      %2124 = vmatprep.subr.mxu0 %v1495
      %2125 = vmatpush1.msra.mxu0 %v1494
      %2126 = vmatprep.subr.mxu0 %v1498
      %2127 = vmatpush1.msra.mxu0 %v1497
      %2128 = vmatprep.subr.mxu0 %v1501
      %2129 = vmatpush1.msra.mxu0 %v1500
      %2130 = vmatprep.subr.mxu0 %v1504
      %2131 = vmatpush1.msra.mxu0 %v1503
      %2132 = vmatprep.subr.mxu0 %v1507
      %2133 = vmatpush1.msra.mxu0 %v1506
      %2134 = vmatprep.subr.mxu0 %v1510
      %2135 = vmatpush1.msra.mxu0 %v1509
      %2136 = vmatprep.subr.mxu0 %v1513
      %2137 = vmatpush1.msra.mxu0 %v1512
      %2138 = vmatprep.subr.mxu0 %v1516
      %2139 = vmatpush1.msra.mxu0 %v1515
      %2140 = vmatprep.subr.mxu0 %v1519
      %2141 = vmatpush1.msra.mxu0 %v1518
      %2142 = vmatprep.subr.mxu0 %v1522
      %2143 = vmatpush1.msra.mxu0 %v1521
      %2144 = vmatprep.subr.mxu0 %v1525
      %2145 = vmatpush1.msra.mxu0 %v1524
      %2146 = vmatprep.subr.mxu0 %v1528
      %2147 = vmatpush1.msra.mxu0 %v1527
      %2148 = vmatprep.subr.mxu0 %v1531
      %2149 = vmatpush1.msra.mxu0 %v1530
      %2150 = vmatprep.subr.mxu0 %v1534
      %2151 = vmatpush1.msra.mxu0 %v1533
      %2152 = vmatprep.subr.mxu0 %v1537
      %2153 = vmatpush1.msra.mxu0 %v1536
      %2154 = vmatprep.subr.mxu0 %v1540
      %2155 = vmatpush1.msra.mxu0 %v1539
      %2156 = vmatprep.subr.mxu0 %v1543
      %2157 = vmatpush1.msra.mxu0 %v1542
      %2158 = vmatprep.subr.mxu0 %v1546
      %2159 = vmatpush1.msra.mxu0 %v1545
      %2160 = vmatprep.subr.mxu0 %v1549
      %2161 = vmatpush1.msra.mxu0 %v1548
      %2162 = vmatprep.subr.mxu0 %v1552
      %2163 = vmatpush1.msra.mxu0 %v1551
      %2164 = vmatprep.subr.mxu0 %v1555
      %2165 = vmatpush1.msra.mxu0 %v1554
      %2166 = vmatprep.subr.mxu0 %v1558
      %2167 = vmatpush1.msra.mxu0 %v1557
      %2168 = vmatprep.subr.mxu0 %v1561
      %2169 = vmatpush1.msra.mxu0 %v1560
      %2170 = vmatprep.mubr.f32.mxu0 %v1436
      %2171 = vmatmul.mubr.f32.gmra.mrb[0].mxu0 %v1435
      %v2172 = vpop.f32.mrb[0].mxu0
      %v2173 = vadd.f32 %v1962, %v2172
      %v2174 = vpop.f32.mrb[0].mxu0
      %v2175 = vadd.f32 %v1964, %v2174
      %2176 = vdwg.mxu0
      %2177 = vmatprep.subr.mxu0 %v1564
      %2178 = vmatpush1.msra.mxu0 %v1563
      %2179 = vmatprep.subr.mxu0 %v1567
      %2180 = vmatpush1.msra.mxu0 %v1566
      %2181 = vmatprep.subr.mxu0 %v1570
      %2182 = vmatpush1.msra.mxu0 %v1569
      %2183 = vmatprep.subr.mxu0 %v1573
      %2184 = vmatpush1.msra.mxu0 %v1572
      %2185 = vmatprep.subr.mxu0 %v1576
      %2186 = vmatpush1.msra.mxu0 %v1575
      %2187 = vmatprep.subr.mxu0 %v1579
      %2188 = vmatpush1.msra.mxu0 %v1578
      %2189 = vmatprep.subr.mxu0 %v1582
      %2190 = vmatpush1.msra.mxu0 %v1581
      %2191 = vmatprep.subr.mxu0 %v1585
      %2192 = vmatpush1.msra.mxu0 %v1584
      %2193 = vmatprep.subr.mxu0 %v1588
      %2194 = vmatpush1.msra.mxu0 %v1587
      %2195 = vmatprep.subr.mxu0 %v1591
      %2196 = vmatpush1.msra.mxu0 %v1590
      %2197 = vmatprep.subr.mxu0 %v1594
      %2198 = vmatpush1.msra.mxu0 %v1593
      %2199 = vmatprep.subr.mxu0 %v1597
      %2200 = vmatpush1.msra.mxu0 %v1596
      %2201 = vmatprep.subr.mxu0 %v1600
      %2202 = vmatpush1.msra.mxu0 %v1599
      %2203 = vmatprep.subr.mxu0 %v1603
      %2204 = vmatpush1.msra.mxu0 %v1602
      %2205 = vmatprep.subr.mxu0 %v1606
      %2206 = vmatpush1.msra.mxu0 %v1605
      %2207 = vmatprep.subr.mxu0 %v1609
      %2208 = vmatpush1.msra.mxu0 %v1608
      %2209 = vmatprep.subr.mxu0 %v1612
      %2210 = vmatpush1.msra.mxu0 %v1611
      %2211 = vmatprep.subr.mxu0 %v1615
      %2212 = vmatpush1.msra.mxu0 %v1614
      %2213 = vmatprep.subr.mxu0 %v1618
      %2214 = vmatpush1.msra.mxu0 %v1617
      %2215 = vmatprep.subr.mxu0 %v1621
      %2216 = vmatpush1.msra.mxu0 %v1620
      %2217 = vmatprep.subr.mxu0 %v1624
      %2218 = vmatpush1.msra.mxu0 %v1623
      %2219 = vmatprep.subr.mxu0 %v1627
      %2220 = vmatpush1.msra.mxu0 %v1626
      %2221 = vmatprep.subr.mxu0 %v1630
      %2222 = vmatpush1.msra.mxu0 %v1629
      %2223 = vmatprep.subr.mxu0 %v1633
      %2224 = vmatpush1.msra.mxu0 %v1632
      %2225 = vmatprep.subr.mxu0 %v1636
      %2226 = vmatpush1.msra.mxu0 %v1635
      %2227 = vmatprep.subr.mxu0 %v1639
      %2228 = vmatpush1.msra.mxu0 %v1638
      %2229 = vmatprep.subr.mxu0 %v1642
      %2230 = vmatpush1.msra.mxu0 %v1641
      %2231 = vmatprep.subr.mxu0 %v1645
      %2232 = vmatpush1.msra.mxu0 %v1644
      %2233 = vmatprep.subr.mxu0 %v1648
      %2234 = vmatpush1.msra.mxu0 %v1647
      %2235 = vmatprep.subr.mxu0 %v1651
      %2236 = vmatpush1.msra.mxu0 %v1650
      %2237 = vmatprep.subr.mxu0 %v1654
      %2238 = vmatpush1.msra.mxu0 %v1653
      %2239 = vmatprep.subr.mxu0 %v1657
      %2240 = vmatpush1.msra.mxu0 %v1656
      %2241 = vmatprep.mubr.f32.mxu0 %v1438
      %2242 = vmatmul.mubr.f32.gmra.mrb[0].mxu0 %v1437
      %v2243 = vpop.f32.mrb[0].mxu0
      %v2244 = vadd.f32 %v2173, %v2243
      %v2245 = vpop.f32.mrb[0].mxu0
      %v2246 = vadd.f32 %v2175, %v2245
      %2247 = vdwg.mxu0
      %2248 = vmatprep.subr.mxu0 0.0
      %2249 = vmatpush1.msra.mxu0 %v1469
      %2250 = vmatprep.subr.mxu0 0.0
      %2251 = vmatpush1.msra.mxu0 %v1472
      %2252 = vmatprep.subr.mxu0 0.0
      %2253 = vmatpush1.msra.mxu0 %v1475
      %2254 = vmatprep.subr.mxu0 0.0
      %2255 = vmatpush1.msra.mxu0 %v1478
      %2256 = vmatprep.subr.mxu0 0.0
      %2257 = vmatpush1.msra.mxu0 %v1481
      %2258 = vmatprep.subr.mxu0 0.0
      %2259 = vmatpush1.msra.mxu0 %v1484
      %2260 = vmatprep.subr.mxu0 0.0
      %2261 = vmatpush1.msra.mxu0 %v1487
      %2262 = vmatprep.subr.mxu0 0.0
      %2263 = vmatpush1.msra.mxu0 %v1490
      %2264 = vmatprep.subr.mxu0 0.0
      %2265 = vmatpush1.msra.mxu0 %v1493
      %2266 = vmatprep.subr.mxu0 0.0
      %2267 = vmatpush1.msra.mxu0 %v1496
      %2268 = vmatprep.subr.mxu0 0.0
      %2269 = vmatpush1.msra.mxu0 %v1499
      %2270 = vmatprep.subr.mxu0 0.0
      %2271 = vmatpush1.msra.mxu0 %v1502
      %2272 = vmatprep.subr.mxu0 0.0
      %2273 = vmatpush1.msra.mxu0 %v1505
      %2274 = vmatprep.subr.mxu0 0.0
      %2275 = vmatpush1.msra.mxu0 %v1508
      %2276 = vmatprep.subr.mxu0 0.0
      %2277 = vmatpush1.msra.mxu0 %v1511
      %2278 = vmatprep.subr.mxu0 0.0
      %2279 = vmatpush1.msra.mxu0 %v1514
      %2280 = vmatprep.subr.mxu0 0.0
      %2281 = vmatpush1.msra.mxu0 %v1517
      %2282 = vmatprep.subr.mxu0 0.0
      %2283 = vmatpush1.msra.mxu0 %v1520
      %2284 = vmatprep.subr.mxu0 0.0
      %2285 = vmatpush1.msra.mxu0 %v1523
      %2286 = vmatprep.subr.mxu0 0.0
      %2287 = vmatpush1.msra.mxu0 %v1526
      %2288 = vmatprep.subr.mxu0 0.0
      %2289 = vmatpush1.msra.mxu0 %v1529
      %2290 = vmatprep.subr.mxu0 0.0
      %2291 = vmatpush1.msra.mxu0 %v1532
      %2292 = vmatprep.subr.mxu0 0.0
      %2293 = vmatpush1.msra.mxu0 %v1535
      %2294 = vmatprep.subr.mxu0 0.0
      %2295 = vmatpush1.msra.mxu0 %v1538
      %2296 = vmatprep.subr.mxu0 0.0
      %2297 = vmatpush1.msra.mxu0 %v1541
      %2298 = vmatprep.subr.mxu0 0.0
      %2299 = vmatpush1.msra.mxu0 %v1544
      %2300 = vmatprep.subr.mxu0 0.0
      %2301 = vmatpush1.msra.mxu0 %v1547
      %2302 = vmatprep.subr.mxu0 0.0
      %2303 = vmatpush1.msra.mxu0 %v1550
      %2304 = vmatprep.subr.mxu0 0.0
      %2305 = vmatpush1.msra.mxu0 %v1553
      %2306 = vmatprep.subr.mxu0 0.0
      %2307 = vmatpush1.msra.mxu0 %v1556
      %2308 = vmatprep.subr.mxu0 0.0
      %2309 = vmatpush1.msra.mxu0 %v1559
      %2310 = vmatprep.subr.mxu0 0.0
      %2311 = vmatpush1.msra.mxu0 %v1562
      %2312 = vmatprep.mubr.f32.mxu0 %v1436
      %2313 = vmatmul.mubr.f32.gmra.mrb[0].mxu0 %v1435
      %v2314 = vpop.f32.mrb[0].mxu0
      %v2315 = vadd.f32 %v2103, %v2314
      %v2316 = vpop.f32.mrb[0].mxu0
      %2317 = vdwg.mxu0
      %2318 = vmatprep.subr.mxu0 0.0
      %2319 = vmatpush1.msra.mxu0 %v1565
      %2320 = vmatprep.subr.mxu0 0.0
      %2321 = vmatpush1.msra.mxu0 %v1568
      %2322 = vmatprep.subr.mxu0 0.0
      %2323 = vmatpush1.msra.mxu0 %v1571
      %2324 = vmatprep.subr.mxu0 0.0
      %2325 = vmatpush1.msra.mxu0 %v1574
      %2326 = vmatprep.subr.mxu0 0.0
      %2327 = vmatpush1.msra.mxu0 %v1577
      %2328 = vmatprep.subr.mxu0 0.0
      %2329 = vmatpush1.msra.mxu0 %v1580
      %2330 = vmatprep.subr.mxu0 0.0
      %2331 = vmatpush1.msra.mxu0 %v1583
      %2332 = vmatprep.subr.mxu0 0.0
      %2333 = vmatpush1.msra.mxu0 %v1586
      %2334 = vmatprep.subr.mxu0 0.0
      %2335 = vmatpush1.msra.mxu0 %v1589
      %2336 = vmatprep.subr.mxu0 0.0
      %2337 = vmatpush1.msra.mxu0 %v1592
      %2338 = vmatprep.subr.mxu0 0.0
      %2339 = vmatpush1.msra.mxu0 %v1595
      %2340 = vmatprep.subr.mxu0 0.0
      %2341 = vmatpush1.msra.mxu0 %v1598
      %2342 = vmatprep.subr.mxu0 0.0
      %2343 = vmatpush1.msra.mxu0 %v1601
      %2344 = vmatprep.subr.mxu0 0.0
      %2345 = vmatpush1.msra.mxu0 %v1604
      %2346 = vmatprep.subr.mxu0 0.0
      %2347 = vmatpush1.msra.mxu0 %v1607
      %2348 = vmatprep.subr.mxu0 0.0
      %2349 = vmatpush1.msra.mxu0 %v1610
      %2350 = vmatprep.subr.mxu0 0.0
      %2351 = vmatpush1.msra.mxu0 %v1613
      %2352 = vmatprep.subr.mxu0 0.0
      %2353 = vmatpush1.msra.mxu0 %v1616
      %2354 = vmatprep.subr.mxu0 0.0
      %2355 = vmatpush1.msra.mxu0 %v1619
      %2356 = vmatprep.subr.mxu0 0.0
      %2357 = vmatpush1.msra.mxu0 %v1622
      %2358 = vmatprep.subr.mxu0 0.0
      %2359 = vmatpush1.msra.mxu0 %v1625
      %2360 = vmatprep.subr.mxu0 0.0
      %2361 = vmatpush1.msra.mxu0 %v1628
      %2362 = vmatprep.subr.mxu0 0.0
      %2363 = vmatpush1.msra.mxu0 %v1631
      %2364 = vmatprep.subr.mxu0 0.0
      %2365 = vmatpush1.msra.mxu0 %v1634
      %2366 = vmatprep.subr.mxu0 0.0
      %2367 = vmatpush1.msra.mxu0 %v1637
      %2368 = vmatprep.subr.mxu0 0.0
      %2369 = vmatpush1.msra.mxu0 %v1640
      %2370 = vmatprep.subr.mxu0 0.0
      %2371 = vmatpush1.msra.mxu0 %v1643
      %2372 = vmatprep.subr.mxu0 0.0
      %2373 = vmatpush1.msra.mxu0 %v1646
      %2374 = vmatprep.subr.mxu0 0.0
      %2375 = vmatpush1.msra.mxu0 %v1649
      %2376 = vmatprep.subr.mxu0 0.0
      %2377 = vmatpush1.msra.mxu0 %v1652
      %2378 = vmatprep.subr.mxu0 0.0
      %2379 = vmatpush1.msra.mxu0 %v1655
      %2380 = vmatprep.subr.mxu0 0.0
      %2381 = vmatpush1.msra.mxu0 %v1658
      %2382 = vmatprep.mubr.f32.mxu0 %v1438
      %2383 = vmatmul.mubr.f32.gmra.mrb[0].mxu0 %v1437
      %v2384 = vpop.f32.mrb[0].mxu0
      %v2385 = vadd.f32 %v2315, %v2384
      %v2386 = vpop.f32.mrb[0].mxu0
      %2387 = vdwg.mxu0
      %v2391 = vcombine.low %v2244, %v2246
      %v2393 = vunpack.c.l.s4 1983009808
      %v2394 = vunpack.c.0.s8 %v2393
      %v2395 = vlaneseq
      %v2396 = vshrl.u32 %v2395, 7
      %v2397 = vsub.s32 %v2394, %v2396
      %v2398 = vrot.slane %v2391, %v2397
      %v2400 = vunpack.c.l.s4 1983009808
      %v2401 = vunpack.c.0.s8 %v2400
      %v2402 = vlaneseq
      %v2403 = vshrl.u32 %v2402, 7
      %v2404 = vsub.s32 %v2401, %v2403
      %v2405 = vrot.slane %v2385, %v2404
      %v2406 = vcombine.low %v2398, %v2405
      %2408 = vst [vmem:[%s419] sm:$0x3f] %v2406
      %s2409 = smul.u32 4, %s22
      %p2410 = scmp.lt.s32.totalorder %s2409, 11
      %s2411 = scalar_select %p2410, %s2409, 11
      %s2412 = smul.addr %s2411, 2
      %s2413 = scalar_lea.vmem %s9, %s2412
      %s2414 = smul.u32 3, %s22
      %p2415 = scmp.lt.s32.totalorder %s2414, 8
      %s2416 = scalar_select %p2415, %s2414, 8
      %s2417 = smul.addr %s2416, 2
      %s2418 = scalar_lea.vmem %s10, %s2417
      // Predicated region
      $region61: #{linear_system_forward.1} parent=55 // pred_check
        %p2419 = pneg %p244
      $region62: #{linear_system_forward.1} parent=55 // pred_check_branch
        %2421 = sbr.rel (%p2419) target = $region64
      $region63: #{linear_system_forward.1} parent=55 // pred_region
        %s2422 = smul.u32 4, %s22
      $region64: #{linear_system_forward.1} parent=55 // pred_fallthru
        _
      // Predicated region
      $region65: #{linear_system_forward.1} parent=55 // pred_check
        %p2423 = pneg %p270
      $region66: #{linear_system_forward.1} parent=55 // pred_check_branch
        %2425 = sbr.rel (%p2423) target = $region68
      $region67: #{linear_system_forward.1} parent=55 // pred_region
        %s2426 = smul.u32 3, %s22
      $region68: #{linear_system_forward.1} parent=55 // pred_fallthru
        _
    $region56: #{linear_system_forward.1} parent=5 // pred_fallthru
      _
    %p2427 = scmp.le.s32.totalorder 2, %s17
    // Predicated region
    $region69: #{linear_system_forward.1} parent=5 // pred_check
      %p2428 = pneg %p2427
    $region70: #{linear_system_forward.1} parent=5 // pred_check_branch
      %2430 = sbr.rel (%p2428) target = $region72
    $region71: #{linear_system_forward.1} parent=5 // pred_region
      %s2431 = ssub.s32 %s17, 2
      // Predicated region
      $region73: #{linear_system_forward.1} parent=71 // pred_check
        %p2432 = pneg %p250
      $region74: #{linear_system_forward.1} parent=71 // pred_check_branch
        %2434 = sbr.rel (%p2432) target = $region76
      $region75: #{linear_system_forward.1} parent=71 // pred_region
        %s2435 = smul.u32 4, %s23
        %p2436 = scmp.lt.s32.totalorder %s2435, 11
        %s2437 = scalar_select %p2436, %s2435, 11
        %s2438 = smul.addr %s2437, 2
        %s2439 = scalar_lea.vmem %s9, %s2438
      $region76: #{linear_system_forward.1} parent=71 // pred_fallthru
        _
      // Predicated region
      $region77: #{linear_system_forward.1} parent=71 // pred_check
        %p2440 = pneg %p276
      $region78: #{linear_system_forward.1} parent=71 // pred_check_branch
        %2442 = sbr.rel (%p2440) target = $region80
      $region79: #{linear_system_forward.1} parent=71 // pred_region
        %s2443 = smul.u32 3, %s23
        %p2444 = scmp.lt.s32.totalorder %s2443, 8
        %s2445 = scalar_select %p2444, %s2443, 8
        %s2446 = smul.addr %s2445, 2
        %s2447 = scalar_lea.vmem %s10, %s2446
      $region80: #{linear_system_forward.1} parent=71 // pred_fallthru
        _
    $region72: #{linear_system_forward.1} parent=5 // pred_fallthru
      _
  $region6: #{linear_system_forward.1} parent=0 // loop_footer
    %s21 = sadd.s32 1, %s17
  $region7: #{linear_system_forward.1} parent=0 // loop_footer_branch
    %16 = sbr.rel target = $region3
  $region8: #{linear_system_forward.1} parent=0 // loop_exit
    _

</llo_original>
